<compile_context>
chip_gen: v7x
topology: tpu7x:2x2x1
jax: 0.10.0
libtpu: 0.0.40
codegen_flags: <defaults>
</compile_context>

<pallas_src>
import functools

import jax
import jax.numpy as jnp
from jax.experimental import pallas as pl
from jax.experimental.pallas import tpu as pltpu


_LANE = 128     # f32 lane width
_SUBLANE = 8    # f32 sublane quantum


def _round_up(n, m):
    return ((n + m - 1) // m) * m


def _pad_axis(x, axis, target):
    pad = target - x.shape[axis]
    if pad == 0:
        return x
    widths = [(0, 0)] * x.ndim
    widths[axis] = (0, pad)
    return jnp.pad(x, widths)


# ---------------------------------------------------------------------------
# Fused kernel.  Grid = (batch tiles, H*W chunks); axis 1 is the GAP reduction.
# ---------------------------------------------------------------------------
def fused_multimodal_kernel(p_true,
                            x_ref, we_ref, be_ref, wp_ref, bps_ref,
                            mble_ref, bns_ref, bnb_ref,
                            w1_ref, b1_ref, w2_ref, b2_ref, wm_ref, bm_ref,
                            lng_ref, lnb_ref, out_ref, gap_acc):
    k = pl.program_id(1)

    # ---- init the GAP accumulator at the first spatial chunk ----------------
    @pl.when(k == 0)
    def _():
        gap_acc[...] = jnp.zeros_like(gap_acc)

    # ---- streamed global-average-pool partial sum (1/(H*W) folded into we) --
    gap_acc[...] += jnp.sum(x_ref[...], axis=-1)                 # [tb, MCp]

    # ---- finalize: encoders, projections, fusion mean, LayerNorm ------------
    @pl.when(k == pl.num_programs(1) - 1)
    def _():
        bf16 = jnp.bfloat16
        f32 = jnp.float32

        # Image modalities: one block-diagonal encoder matmul + GELU, then one
        # row-concatenated projection matmul (which also sums the modalities).
        gap = gap_acc[...].astype(bf16)                          # [tb, MCp]
        h = jnp.dot(gap, we_ref[...], preferred_element_type=f32) + be_ref[...]
        h = jax.nn.gelu(h, approximate=True)                     # [tb, MFp]
        acc = jnp.dot(h.astype(bf16), wp_ref[...],
                      preferred_element_type=f32) + bps_ref[...]  # [tb, Pp]

        # mBle path: BatchNorm (pre-folded affine), FC encoder, projection.
        xn = mble_ref[...] * bns_ref[...] + bnb_ref[...]         # [tb, D]
        h1 = jax.nn.gelu(
            jnp.dot(xn.astype(bf16), w1_ref[...], preferred_element_type=f32)
            + b1_ref[...], approximate=True)
        enc = jnp.dot(h1.astype(bf16), w2_ref[...],
                      preferred_element_type=f32) + b2_ref[...]
        acc = acc + jnp.dot(enc.astype(bf16), wm_ref[...],
                            preferred_element_type=f32) + bm_ref[...]

        # 'projection' fusion mean (1/num_modalities already folded into
        # wp/bp/wm/bm) followed by LayerNorm over the true proj_dim columns.
        lane = jax.lax.broadcasted_iota(jnp.int32, acc.shape, 1)
        mask = lane < p_true
        inv_p = 1.0 / p_true
        mu = jnp.sum(acc, axis=-1, keepdims=True) * inv_p        # pad cols are 0
        cen = jnp.where(mask, acc - mu, 0.0)
        var = jnp.sum(cen * cen, axis=-1, keepdims=True) * inv_p
        out_ref[...] = (cen * jax.lax.rsqrt(var + 1e-5) * lng_ref[...]
                        + lnb_ref[...])


# ---------------------------------------------------------------------------
# Per-generation tiling heuristics.
# ---------------------------------------------------------------------------
def _device_kind():
    try:
        return jax.devices()[0].device_kind.lower()
    except Exception:
        return ""


def _preferred_batch_tile(kind):
    # v5e: 4x128^2 MXUs -> 128-row tiles; v6e/v7x: 2x256^2 -> 256-row tiles.
    if "v5 lite" in kind or "v5e" in kind or "v5litepod" in kind:
        return 128
    return 256


def _vmem_limit_bytes(kind):
    # v7x: 64 MiB physical VMEM -> leave headroom; v5e/v6e: 128 MiB physical.
    return (48 << 20) if "v7" in kind else (64 << 20)


def _spatial_chunk(hw, tb, mcp, kind):
    """Largest 128-multiple chunk dividing hw whose double-buffered x block
    stays inside a per-generation VMEM budget."""
    if hw % _LANE != 0:
        return hw                                   # single full-extent block
    budget = (4 << 20) if ("v5 lite" in kind or "v5e" in kind) else (8 << 20)
    per_lane = tb * mcp * 4                         # f32 bytes per streamed lane
    max_c = max(_LANE, (budget // per_lane) // _LANE * _LANE)
    c = min(hw, max_c)
    while hw % c:
        c -= _LANE
    return c


# ---------------------------------------------------------------------------
# Parameter init (deterministic synthetic weights) + forward wrapper.
# ---------------------------------------------------------------------------
def init_params(key, img_names, C, mble_in, hidden, out_feature, proj_dim):
    keys = iter(jax.random.split(key, 4 * len(img_names) + 6))
    params = {"img": {}}
    for name in img_names:
        params["img"][name] = {
            "w_enc": 0.1 * jax.random.normal(next(keys), (C, out_feature), jnp.float32),
            "b_enc": 0.1 * jax.random.normal(next(keys), (out_feature,), jnp.float32),
            "w_proj": 0.1 * jax.random.normal(next(keys), (out_feature, proj_dim), jnp.float32),
            "b_proj": 0.1 * jax.random.normal(next(keys), (proj_dim,), jnp.float32),
        }
    params["bn_gamma"] = jnp.ones((1, mble_in), jnp.float32)
    params["bn_beta"] = jnp.zeros((1, mble_in), jnp.float32)
    params["mble_w1"] = 0.1 * jax.random.normal(next(keys), (mble_in, hidden), jnp.float32)
    params["mble_b1"] = 0.1 * jax.random.normal(next(keys), (1, hidden), jnp.float32)
    params["mble_w2"] = 0.1 * jax.random.normal(next(keys), (hidden, out_feature), jnp.float32)
    params["mble_b2"] = 0.1 * jax.random.normal(next(keys), (1, out_feature), jnp.float32)
    params["mble_wp"] = 0.1 * jax.random.normal(next(keys), (out_feature, proj_dim), jnp.float32)
    params["mble_bp"] = 0.1 * jax.random.normal(next(keys), (1, proj_dim), jnp.float32)
    params["ln_gamma"] = jnp.ones((1, proj_dim), jnp.float32)
    params["ln_beta"] = jnp.zeros((1, proj_dim), jnp.float32)
    return params


def multimodal_forward(params, inputs, mble_inputs, modal_listname, *,
                       spatial_chunk=None):
    # Mirrors the PyTorch forward's modality-name bookkeeping.
    names = [t[0] for t in modal_listname]
    names.remove("mBle")
    B, M_img, C, H, W = inputs.shape
    assert M_img == len(names)
    num_modalities = M_img + 1                        # + mBle
    HW = H * W

    D = mble_inputs.shape[-1]
    F = params["img"][names[0]]["w_enc"].shape[-1]
    Hd = params["mble_w1"].shape[-1]
    P = params["ln_gamma"].shape[-1]

    kind = _device_kind()
    tb = min(_preferred_batch_tile(kind), _round_up(B, _SUBLANE))
    Bp = _round_up(B, tb)
    MC, MF = M_img * C, M_img * F
    MCp = _round_up(MC, _SUBLANE)
    MFp = _round_up(MF, _LANE)
    Hp = _round_up(Hd, _LANE)
    Fp = _round_up(F, _LANE)
    Pp = _round_up(P, _LANE)

    chunk = spatial_chunk if spatial_chunk is not None else _spatial_chunk(HW, tb, MCp, kind)
    assert HW % chunk == 0 and (chunk % _LANE == 0 or chunk == HW)

    bf16 = jnp.bfloat16
    inv_hw = 1.0 / HW
    inv_m = 1.0 / num_modalities

    # Image tensor: free contiguous reshape [B,M,C,H,W] -> [B, M*C, H*W] (no
    # transpose); pad batch to the tile and M*C to the sublane quantum so every
    # streamed block is (8,128)-aligned.
    x = inputs.reshape(B, MC, HW)
    x = _pad_axis(_pad_axis(x, 0, Bp), 1, MCp)

    # Block-diagonal per-modality encoder weight (GAP 1/(H*W) folded in), bf16.
    we_bd = jnp.zeros((MC, MF), jnp.float32)
    for m, n in enumerate(names):
        we_bd = we_bd.at[m * C:(m + 1) * C, m * F:(m + 1) * F].set(
            params["img"][n]["w_enc"])
    we_bd = _pad_axis(_pad_axis(we_bd * inv_hw, 0, MCp), 1, MFp).astype(bf16)
    be_cat = _pad_axis(
        jnp.concatenate([params["img"][n]["b_enc"] for n in names])[None, :], 1, MFp)
    # Row-concatenated projection weight: one matmul does every per-modality
    # projection AND the modality sum; fusion mean (1/num_modalities) folded in.
    wp_cat = _pad_axis(_pad_axis(
        jnp.concatenate([params["img"][n]["w_proj"] for n in names], axis=0) * inv_m,
        0, MFp), 1, Pp).astype(bf16)
    bp_sum = _pad_axis(
        sum(params["img"][n]["b_proj"] for n in names)[None, :] * inv_m, 1, Pp)

    # mBle path: BatchNorm1d (training-mode batch statistics over the true
    # batch rows) folded into a per-feature affine so the batch axis can be
    # tiled inside the kernel.  TODO(synk): eval-mode would use running stats.
    xb = mble_inputs[:, 0, :]                                   # .squeeze(1)
    mu = jnp.mean(xb, axis=0, keepdims=True)
    var = jnp.mean((xb - mu) ** 2, axis=0, keepdims=True)
    bn_scale = params["bn_gamma"] * jax.lax.rsqrt(var + 1e-5)
    bn_shift = params["bn_beta"] - mu * bn_scale
    mble = _pad_axis(xb, 0, Bp)

    w1 = _pad_axis(params["mble_w1"], 1, Hp).astype(bf16)
    b1 = _pad_axis(params["mble_b1"], 1, Hp)
    w2 = _pad_axis(_pad_axis(params["mble_w2"], 0, Hp), 1, Fp).astype(bf16)
    b2 = _pad_axis(params["mble_b2"], 1, Fp)
    wm = _pad_axis(_pad_axis(params["mble_wp"] * inv_m, 0, Fp), 1, Pp).astype(bf16)
    bm = _pad_axis(params["mble_bp"] * inv_m, 1, Pp)
    ln_g = _pad_axis(params["ln_gamma"], 1, Pp)
    ln_b = _pad_axis(params["ln_beta"], 1, Pp)

    kern = functools.partial(fused_multimodal_kernel, int(P))
    grid = (Bp // tb, HW // chunk)
    const = lambda i, k: (0, 0)                      # weights stay resident

    out = pl.pallas_call(
        kern,
        grid=grid,
        in_specs=[
            pl.BlockSpec((tb, MCp, chunk), lambda i, k: (i, 0, k)),   # streamed x
            pl.BlockSpec((MCp, MFp), const),
            pl.BlockSpec((1, MFp), const),
            pl.BlockSpec((MFp, Pp), const),
            pl.BlockSpec((1, Pp), const),
            pl.BlockSpec((tb, D), lambda i, k: (i, 0)),
            pl.BlockSpec((1, D), const),
            pl.BlockSpec((1, D), const),
            pl.BlockSpec((D, Hp), const),
            pl.BlockSpec((1, Hp), const),
            pl.BlockSpec((Hp, Fp), const),
            pl.BlockSpec((1, Fp), const),
            pl.BlockSpec((Fp, Pp), const),
            pl.BlockSpec((1, Pp), const),
            pl.BlockSpec((1, Pp), const),
            pl.BlockSpec((1, Pp), const),
        ],
        out_specs=pl.BlockSpec((tb, Pp), lambda i, k: (i, 0)),
        out_shape=jax.ShapeDtypeStruct((Bp, Pp), jnp.float32),
        scratch_shapes=[pltpu.VMEM((tb, MCp), jnp.float32)],
        compiler_params=pltpu.CompilerParams(
            dimension_semantics=("parallel", "arbitrary"),
            vmem_limit_bytes=_vmem_limit_bytes(kind)),
    )(x, we_bd, be_cat, wp_cat, bp_sum, mble, bn_scale, bn_shift,
      w1, b1, w2, b2, wm, bm, ln_g, ln_b)
    return out[:B, :P]


# ---------------------------------------------------------------------------
# Pure-JAX f32 reference (same synthetic-encoder semantics) for validation.
# ---------------------------------------------------------------------------
def reference_forward(params, inputs, mble_inputs, modal_listname):
    names = [t[0] for t in modal_listname]
    names.remove("mBle")
    encoded = []
    for idx, n in enumerate(names):
        gap = jnp.mean(inputs[:, idx], axis=(2, 3))
        h = jax.nn.gelu(gap @ params["img"][n]["w_enc"] + params["img"][n]["b_enc"],
                        approximate=True)
        encoded.append(h @ params["img"][n]["w_proj"] + params["img"][n]["b_proj"])
    xb = mble_inputs[:, 0, :]
    mu = jnp.mean(xb, axis=0, keepdims=True)
    var = jnp.mean((xb - mu) ** 2, axis=0, keepdims=True)
    xn = (xb - mu) * jax.lax.rsqrt(var + 1e-5) * params["bn_gamma"] + params["bn_beta"]
    h1 = jax.nn.gelu(xn @ params["mble_w1"] + params["mble_b1"], approximate=True)
    enc = h1 @ params["mble_w2"] + params["mble_b2"]
    encoded.append(enc @ params["mble_wp"] + params["mble_bp"])
    fused = jnp.mean(jnp.stack(encoded, axis=1), axis=1)
    mu_f = jnp.mean(fused, axis=-1, keepdims=True)
    var_f = jnp.mean((fused - mu_f) ** 2, axis=-1, keepdims=True)
    return (fused - mu_f) * jax.lax.rsqrt(var_f + 1e-5) * params["ln_gamma"] + params["ln_beta"]


if __name__ == "__main__":
    B, C, H, W = 2, 4, 16, 16
    MBLE_IN, HIDDEN, OUT_FEATURE, PROJ_DIM = 10, 16, 32, 32
    modal_listname = [("mAmbience",), ("mGps",), ("mLight",), ("mBle",)]
    img_names = [t[0] for t in modal_listname if t[0] != "mBle"]
    M_IMG = len(img_names)

    key = jax.random.PRNGKey(0)
    k_in, k_ble, k_par = jax.random.split(key, 3)
    inputs = jax.random.normal(k_in, (B, M_IMG, C, H, W), jnp.float32)
    mble_inputs = jax.random.normal(k_ble, (B, 1, MBLE_IN), jnp.float32)
    params = init_params(k_par, img_names, C, MBLE_IN, HIDDEN, OUT_FEATURE, PROJ_DIM)

    out = multimodal_forward(params, inputs, mble_inputs, modal_listname)
    out = jax.block_until_ready(out)
    assert out.shape == (B, PROJ_DIM), out.shape
    assert bool(jnp.all(jnp.isfinite(out)))

    ref = reference_forward(params, inputs, mble_inputs, modal_listname)
    assert bool(jnp.allclose(out, ref, atol=5e-2, rtol=5e-2)), \
        float(jnp.max(jnp.abs(out - ref)))

    # Also exercise the multi-step H*W reduction grid (2 chunks of 128 lanes).
    out2 = jax.block_until_ready(
        multimodal_forward(params, inputs, mble_inputs, modal_listname,
                           spatial_chunk=128))
    assert bool(jnp.allclose(out2, ref, atol=5e-2, rtol=5e-2)), \
        float(jnp.max(jnp.abs(out2 - ref)))

    print("KERNEL_OK")
</pallas_src>

<mosaic_0001>
module attributes {stable_mosaic.version = 11 : i64} {
  func.func @fused_multimodal_kernel(%arg0: i32, %arg1: i32, %arg2: memref<8x16x256xf32, #tpu.memory_space<vmem>>, %arg3: memref<16x128xbf16, #tpu.memory_space<vmem>>, %arg4: memref<1x128xf32, #tpu.memory_space<vmem>>, %arg5: memref<128x128xbf16, #tpu.memory_space<vmem>>, %arg6: memref<1x128xf32, #tpu.memory_space<vmem>>, %arg7: memref<8x10xf32, #tpu.memory_space<vmem>>, %arg8: memref<1x10xf32, #tpu.memory_space<vmem>>, %arg9: memref<1x10xf32, #tpu.memory_space<vmem>>, %arg10: memref<10x128xbf16, #tpu.memory_space<vmem>>, %arg11: memref<1x128xf32, #tpu.memory_space<vmem>>, %arg12: memref<128x128xbf16, #tpu.memory_space<vmem>>, %arg13: memref<1x128xf32, #tpu.memory_space<vmem>>, %arg14: memref<128x128xbf16, #tpu.memory_space<vmem>>, %arg15: memref<1x128xf32, #tpu.memory_space<vmem>>, %arg16: memref<1x128xf32, #tpu.memory_space<vmem>>, %arg17: memref<1x128xf32, #tpu.memory_space<vmem>>, %arg18: memref<8x128xf32, #tpu.memory_space<vmem>>, %arg19: memref<8x16xf32, #tpu.memory_space<vmem>>) attributes {dimension_semantics = [#tpu.dimension_semantics<parallel>, #tpu.dimension_semantics<arbitrary>], iteration_bounds = array<i64: 1, 1>, scalar_prefetch = 0 : i64, scratch_operands = 1 : i64, tpu.core_type = #tpu.core_type<tc>, window_params = [{transform_indices = @transform_0, window_bounds = array<i64: 8, 16, 256>}, {pipeline_mode = #tpu.pipeline_mode<synchronous>, transform_indices = @transform_1, window_bounds = array<i64: 16, 128>}, {pipeline_mode = #tpu.pipeline_mode<synchronous>, transform_indices = @transform_2, window_bounds = array<i64: 1, 128>}, {pipeline_mode = #tpu.pipeline_mode<synchronous>, transform_indices = @transform_3, window_bounds = array<i64: 128, 128>}, {pipeline_mode = #tpu.pipeline_mode<synchronous>, transform_indices = @transform_4, window_bounds = array<i64: 1, 128>}, {transform_indices = @transform_5, window_bounds = array<i64: 8, 10>}, {pipeline_mode = #tpu.pipeline_mode<synchronous>, transform_indices = @transform_6, window_bounds = array<i64: 1, 10>}, {pipeline_mode = #tpu.pipeline_mode<synchronous>, transform_indices = @transform_7, window_bounds = array<i64: 1, 10>}, {pipeline_mode = #tpu.pipeline_mode<synchronous>, transform_indices = @transform_8, window_bounds = array<i64: 10, 128>}, {pipeline_mode = #tpu.pipeline_mode<synchronous>, transform_indices = @transform_9, window_bounds = array<i64: 1, 128>}, {pipeline_mode = #tpu.pipeline_mode<synchronous>, transform_indices = @transform_10, window_bounds = array<i64: 128, 128>}, {pipeline_mode = #tpu.pipeline_mode<synchronous>, transform_indices = @transform_11, window_bounds = array<i64: 1, 128>}, {pipeline_mode = #tpu.pipeline_mode<synchronous>, transform_indices = @transform_12, window_bounds = array<i64: 128, 128>}, {pipeline_mode = #tpu.pipeline_mode<synchronous>, transform_indices = @transform_13, window_bounds = array<i64: 1, 128>}, {pipeline_mode = #tpu.pipeline_mode<synchronous>, transform_indices = @transform_14, window_bounds = array<i64: 1, 128>}, {pipeline_mode = #tpu.pipeline_mode<synchronous>, transform_indices = @transform_15, window_bounds = array<i64: 1, 128>}, {transform_indices = @transform_16, window_bounds = array<i64: 8, 128>}]} {
    %c0_i32 = arith.constant 0 : i32
    %0 = arith.cmpi eq, %arg1, %c0_i32 : i32
    %1 = arith.extui %0 : i1 to i32
    %c0_i32_0 = arith.constant 0 : i32
    %2 = arith.cmpi ne, %1, %c0_i32_0 : i32
    scf.if %2 {
      %cst_9 = arith.constant 0.000000e+00 : f32
      %11 = vector.broadcast %cst_9 : f32 to vector<8x16xf32>
      %c0_10 = arith.constant 0 : index
      %c0_11 = arith.constant 0 : index
      %12 = vector.load %arg19[%c0_10, %c0_11] : memref<8x16xf32, #tpu.memory_space<vmem>>, vector<8x16xf32>
      tpu.vector_store %arg19[%c0_10, %c0_11], %11 {strides = array<i32>} : memref<8x16xf32, #tpu.memory_space<vmem>>, vector<8x16xf32>,
    } else {
    }
    %c0 = arith.constant 0 : index
    %c0_1 = arith.constant 0 : index
    %3 = vector.load %arg19[%c0, %c0_1] : memref<8x16xf32, #tpu.memory_space<vmem>>, vector<8x16xf32>
    %c0_2 = arith.constant 0 : index
    %c0_3 = arith.constant 0 : index
    %c0_4 = arith.constant 0 : index
    %4 = vector.load %arg2[%c0_2, %c0_3, %c0_4] : memref<8x16x256xf32, #tpu.memory_space<vmem>>, vector<8x16x256xf32>
    %cst = arith.constant dense<0.000000e+00> : vector<8x16xf32>
    %5 = vector.multi_reduction <add>, %4, %cst [2] : vector<8x16x256xf32> to vector<8x16xf32>
    %6 = arith.addf %3, %5 : vector<8x16xf32>
    %c0_5 = arith.constant 0 : index
    %c0_6 = arith.constant 0 : index
    %7 = vector.load %arg19[%c0_5, %c0_6] : memref<8x16xf32, #tpu.memory_space<vmem>>, vector<8x16xf32>
    tpu.vector_store %arg19[%c0_5, %c0_6], %6 {strides = array<i32>} : memref<8x16xf32, #tpu.memory_space<vmem>>, vector<8x16xf32>,
    %c0_i32_7 = arith.constant 0 : i32
    %8 = arith.cmpi eq, %arg1, %c0_i32_7 : i32
    %9 = arith.extui %8 : i1 to i32
    %c0_i32_8 = arith.constant 0 : i32
    %10 = arith.cmpi ne, %9, %c0_i32_8 : i32
    scf.if %10 {
      %c0_9 = arith.constant 0 : index
      %c0_10 = arith.constant 0 : index
      %11 = vector.load %arg19[%c0_9, %c0_10] : memref<8x16xf32, #tpu.memory_space<vmem>>, vector<8x16xf32>
      %12 = arith.truncf %11 : vector<8x16xf32> to vector<8x16xbf16>
      %c0_11 = arith.constant 0 : index
      %c0_12 = arith.constant 0 : index
      %13 = vector.load %arg3[%c0_11, %c0_12] : memref<16x128xbf16, #tpu.memory_space<vmem>>, vector<16x128xbf16>
      %cst_13 = arith.constant dense<0.000000e+00> : vector<8x128xf32>
      %14 = tpu.matmul %12, %13, %cst_13 {dimension_numbers = #tpu.dot_dimension_numbers<[1], [0], [0], [1], [0, 0, 1, 1], [], []>} : vector<8x16xbf16>, vector<16x128xbf16>, vector<8x128xf32> -> vector<8x128xf32>
      %c0_14 = arith.constant 0 : index
      %c0_15 = arith.constant 0 : index
      %15 = vector.load %arg4[%c0_14, %c0_15] : memref<1x128xf32, #tpu.memory_space<vmem>>, vector<1x128xf32>
      %16 = vector.broadcast %15 : vector<1x128xf32> to vector<8x128xf32>
      %17 = arith.addf %14, %16 : vector<8x128xf32>
      %18 = arith.mulf %17, %17 : vector<8x128xf32>
      %19 = arith.mulf %17, %18 : vector<8x128xf32>
      %cst_16 = arith.constant 4.471500e-02 : f32
      %20 = vector.broadcast %cst_16 : f32 to vector<8x128xf32>
      %21 = arith.mulf %20, %19 : vector<8x128xf32>
      %22 = arith.addf %17, %21 : vector<8x128xf32>
      %cst_17 = arith.constant 0.797884583 : f32
      %23 = vector.broadcast %cst_17 : f32 to vector<8x128xf32>
      %24 = arith.mulf %23, %22 : vector<8x128xf32>
      %25 = math.tanh %24 : vector<8x128xf32>
      %cst_18 = arith.constant 1.000000e+00 : f32
      %26 = vector.broadcast %cst_18 : f32 to vector<8x128xf32>
      %27 = arith.addf %26, %25 : vector<8x128xf32>
      %cst_19 = arith.constant 5.000000e-01 : f32
      %28 = vector.broadcast %cst_19 : f32 to vector<8x128xf32>
      %29 = arith.mulf %28, %27 : vector<8x128xf32>
      %30 = arith.mulf %17, %29 : vector<8x128xf32>
      %31 = arith.truncf %30 : vector<8x128xf32> to vector<8x128xbf16>
      %c0_20 = arith.constant 0 : index
      %c0_21 = arith.constant 0 : index
      %32 = vector.load %arg5[%c0_20, %c0_21] : memref<128x128xbf16, #tpu.memory_space<vmem>>, vector<128x128xbf16>
      %cst_22 = arith.constant dense<0.000000e+00> : vector<8x128xf32>
      %33 = tpu.matmul %31, %32, %cst_22 {dimension_numbers = #tpu.dot_dimension_numbers<[1], [0], [0], [1], [0, 0, 1, 1], [], []>} : vector<8x128xbf16>, vector<128x128xbf16>, vector<8x128xf32> -> vector<8x128xf32>
      %c0_23 = arith.constant 0 : index
      %c0_24 = arith.constant 0 : index
      %34 = vector.load %arg6[%c0_23, %c0_24] : memref<1x128xf32, #tpu.memory_space<vmem>>, vector<1x128xf32>
      %35 = vector.broadcast %34 : vector<1x128xf32> to vector<8x128xf32>
      %36 = arith.addf %33, %35 : vector<8x128xf32>
      %c0_25 = arith.constant 0 : index
      %c0_26 = arith.constant 0 : index
      %37 = vector.load %arg7[%c0_25, %c0_26] : memref<8x10xf32, #tpu.memory_space<vmem>>, vector<8x10xf32>
      %c0_27 = arith.constant 0 : index
      %c0_28 = arith.constant 0 : index
      %38 = vector.load %arg8[%c0_27, %c0_28] : memref<1x10xf32, #tpu.memory_space<vmem>>, vector<1x10xf32>
      %39 = vector.broadcast %38 : vector<1x10xf32> to vector<8x10xf32>
      %40 = arith.mulf %37, %39 : vector<8x10xf32>
      %c0_29 = arith.constant 0 : index
      %c0_30 = arith.constant 0 : index
      %41 = vector.load %arg9[%c0_29, %c0_30] : memref<1x10xf32, #tpu.memory_space<vmem>>, vector<1x10xf32>
      %42 = vector.broadcast %41 : vector<1x10xf32> to vector<8x10xf32>
      %43 = arith.addf %40, %42 : vector<8x10xf32>
      %44 = arith.truncf %43 : vector<8x10xf32> to vector<8x10xbf16>
      %c0_31 = arith.constant 0 : index
      %c0_32 = arith.constant 0 : index
      %45 = vector.load %arg10[%c0_31, %c0_32] : memref<10x128xbf16, #tpu.memory_space<vmem>>, vector<10x128xbf16>
      %cst_33 = arith.constant dense<0.000000e+00> : vector<8x128xf32>
      %46 = tpu.matmul %44, %45, %cst_33 {dimension_numbers = #tpu.dot_dimension_numbers<[1], [0], [0], [1], [0, 0, 1, 1], [], []>} : vector<8x10xbf16>, vector<10x128xbf16>, vector<8x128xf32> -> vector<8x128xf32>
      %c0_34 = arith.constant 0 : index
      %c0_35 = arith.constant 0 : index
      %47 = vector.load %arg11[%c0_34, %c0_35] : memref<1x128xf32, #tpu.memory_space<vmem>>, vector<1x128xf32>
      %48 = vector.broadcast %47 : vector<1x128xf32> to vector<8x128xf32>
      %49 = arith.addf %46, %48 : vector<8x128xf32>
      %50 = arith.mulf %49, %49 : vector<8x128xf32>
      %51 = arith.mulf %49, %50 : vector<8x128xf32>
      %cst_36 = arith.constant 4.471500e-02 : f32
      %52 = vector.broadcast %cst_36 : f32 to vector<8x128xf32>
      %53 = arith.mulf %52, %51 : vector<8x128xf32>
      %54 = arith.addf %49, %53 : vector<8x128xf32>
      %cst_37 = arith.constant 0.797884583 : f32
      %55 = vector.broadcast %cst_37 : f32 to vector<8x128xf32>
      %56 = arith.mulf %55, %54 : vector<8x128xf32>
      %57 = math.tanh %56 : vector<8x128xf32>
      %cst_38 = arith.constant 1.000000e+00 : f32
      %58 = vector.broadcast %cst_38 : f32 to vector<8x128xf32>
      %59 = arith.addf %58, %57 : vector<8x128xf32>
      %cst_39 = arith.constant 5.000000e-01 : f32
      %60 = vector.broadcast %cst_39 : f32 to vector<8x128xf32>
      %61 = arith.mulf %60, %59 : vector<8x128xf32>
      %62 = arith.mulf %49, %61 : vector<8x128xf32>
      %63 = arith.truncf %62 : vector<8x128xf32> to vector<8x128xbf16>
      %c0_40 = arith.constant 0 : index
      %c0_41 = arith.constant 0 : index
      %64 = vector.load %arg12[%c0_40, %c0_41] : memref<128x128xbf16, #tpu.memory_space<vmem>>, vector<128x128xbf16>
      %cst_42 = arith.constant dense<0.000000e+00> : vector<8x128xf32>
      %65 = tpu.matmul %63, %64, %cst_42 {dimension_numbers = #tpu.dot_dimension_numbers<[1], [0], [0], [1], [0, 0, 1, 1], [], []>} : vector<8x128xbf16>, vector<128x128xbf16>, vector<8x128xf32> -> vector<8x128xf32>
      %c0_43 = arith.constant 0 : index
      %c0_44 = arith.constant 0 : index
      %66 = vector.load %arg13[%c0_43, %c0_44] : memref<1x128xf32, #tpu.memory_space<vmem>>, vector<1x128xf32>
      %67 = vector.broadcast %66 : vector<1x128xf32> to vector<8x128xf32>
      %68 = arith.addf %65, %67 : vector<8x128xf32>
      %69 = arith.truncf %68 : vector<8x128xf32> to vector<8x128xbf16>
      %c0_45 = arith.constant 0 : index
      %c0_46 = arith.constant 0 : index
      %70 = vector.load %arg14[%c0_45, %c0_46] : memref<128x128xbf16, #tpu.memory_space<vmem>>, vector<128x128xbf16>
      %cst_47 = arith.constant dense<0.000000e+00> : vector<8x128xf32>
      %71 = tpu.matmul %69, %70, %cst_47 {dimension_numbers = #tpu.dot_dimension_numbers<[1], [0], [0], [1], [0, 0, 1, 1], [], []>} : vector<8x128xbf16>, vector<128x128xbf16>, vector<8x128xf32> -> vector<8x128xf32>
      %72 = arith.addf %36, %71 : vector<8x128xf32>
      %c0_48 = arith.constant 0 : index
      %c0_49 = arith.constant 0 : index
      %73 = vector.load %arg15[%c0_48, %c0_49] : memref<1x128xf32, #tpu.memory_space<vmem>>, vector<1x128xf32>
      %74 = vector.broadcast %73 : vector<1x128xf32> to vector<8x128xf32>
      %75 = arith.addf %72, %74 : vector<8x128xf32>
      %76 = tpu.iota {dimensions = array<i32: 1>} : vector<8x128xi32>
      %c32_i32 = arith.constant 32 : i32
      %77 = vector.broadcast %c32_i32 : i32 to vector<8x128xi32>
      %78 = arith.cmpi slt, %76, %77 : vector<8x128xi32>
      %cst_50 = arith.constant dense<0.000000e+00> : vector<8xf32>
      %79 = vector.multi_reduction <add>, %75, %cst_50 [1] : vector<8x128xf32> to vector<8xf32>
      %80 = vector.shape_cast %79 : vector<8xf32> to vector<8x1xf32>
      %cst_51 = arith.constant 3.125000e-02 : f32
      %81 = vector.broadcast %cst_51 : f32 to vector<8x1xf32>
      %82 = arith.mulf %80, %81 : vector<8x1xf32>
      %83 = vector.broadcast %82 : vector<8x1xf32> to vector<8x128xf32>
      %84 = arith.subf %75, %83 : vector<8x128xf32>
      %cst_52 = arith.constant 0.000000e+00 : f32
      %85 = vector.broadcast %cst_52 : f32 to vector<8x128xf32>
      %86 = arith.select %78, %84, %85 : vector<8x128xi1>, vector<8x128xf32>
      %87 = arith.mulf %86, %86 : vector<8x128xf32>
      %cst_53 = arith.constant dense<0.000000e+00> : vector<8xf32>
      %88 = vector.multi_reduction <add>, %87, %cst_53 [1] : vector<8x128xf32> to vector<8xf32>
      %89 = vector.shape_cast %88 : vector<8xf32> to vector<8x1xf32>
      %cst_54 = arith.constant 3.125000e-02 : f32
      %90 = vector.broadcast %cst_54 : f32 to vector<8x1xf32>
      %91 = arith.mulf %89, %90 : vector<8x1xf32>
      %cst_55 = arith.constant 9.99999974E-6 : f32
      %92 = vector.broadcast %cst_55 : f32 to vector<8x1xf32>
      %93 = arith.addf %91, %92 : vector<8x1xf32>
      %94 = math.rsqrt %93 : vector<8x1xf32>
      %95 = vector.broadcast %94 : vector<8x1xf32> to vector<8x128xf32>
      %96 = arith.mulf %86, %95 : vector<8x128xf32>
      %c0_56 = arith.constant 0 : index
      %c0_57 = arith.constant 0 : index
      %97 = vector.load %arg16[%c0_56, %c0_57] : memref<1x128xf32, #tpu.memory_space<vmem>>, vector<1x128xf32>
      %98 = vector.broadcast %97 : vector<1x128xf32> to vector<8x128xf32>
      %99 = arith.mulf %96, %98 : vector<8x128xf32>
      %c0_58 = arith.constant 0 : index
      %c0_59 = arith.constant 0 : index
      %100 = vector.load %arg17[%c0_58, %c0_59] : memref<1x128xf32, #tpu.memory_space<vmem>>, vector<1x128xf32>
      %101 = vector.broadcast %100 : vector<1x128xf32> to vector<8x128xf32>
      %102 = arith.addf %99, %101 : vector<8x128xf32>
      %c0_60 = arith.constant 0 : index
      %c0_61 = arith.constant 0 : index
      %103 = vector.load %arg18[%c0_60, %c0_61] : memref<8x128xf32, #tpu.memory_space<vmem>>, vector<8x128xf32>
      tpu.vector_store %arg18[%c0_60, %c0_61], %102 {strides = array<i32>} : memref<8x128xf32, #tpu.memory_space<vmem>>, vector<8x128xf32>,
    } else {
    }
    return
  }
  func.func @transform_0(%arg0: i32, %arg1: i32) -> (i32, i32, i32) {
    %c0_i32 = arith.constant 0 : i32
    %c0_i32_0 = arith.constant 0 : i32
    return %arg0, %c0_i32, %arg1 : i32, i32, i32
  }
  func.func @transform_1(%arg0: i32, %arg1: i32) -> (i32, i32) {
    %c0_i32 = arith.constant 0 : i32
    %c0_i32_0 = arith.constant 0 : i32
    %c0_i32_1 = arith.constant 0 : i32
    return %c0_i32, %c0_i32_0 : i32, i32
  }
  func.func @transform_2(%arg0: i32, %arg1: i32) -> (i32, i32) {
    %c0_i32 = arith.constant 0 : i32
    %c0_i32_0 = arith.constant 0 : i32
    %c0_i32_1 = arith.constant 0 : i32
    return %c0_i32, %c0_i32_0 : i32, i32
  }
  func.func @transform_3(%arg0: i32, %arg1: i32) -> (i32, i32) {
    %c0_i32 = arith.constant 0 : i32
    %c0_i32_0 = arith.constant 0 : i32
    %c0_i32_1 = arith.constant 0 : i32
    return %c0_i32, %c0_i32_0 : i32, i32
  }
  func.func @transform_4(%arg0: i32, %arg1: i32) -> (i32, i32) {
    %c0_i32 = arith.constant 0 : i32
    %c0_i32_0 = arith.constant 0 : i32
    %c0_i32_1 = arith.constant 0 : i32
    return %c0_i32, %c0_i32_0 : i32, i32
  }
  func.func @transform_5(%arg0: i32, %arg1: i32) -> (i32, i32) {
    %c0_i32 = arith.constant 0 : i32
    %c0_i32_0 = arith.constant 0 : i32
    return %arg0, %c0_i32 : i32, i32
  }
  func.func @transform_6(%arg0: i32, %arg1: i32) -> (i32, i32) {
    %c0_i32 = arith.constant 0 : i32
    %c0_i32_0 = arith.constant 0 : i32
    %c0_i32_1 = arith.constant 0 : i32
    return %c0_i32, %c0_i32_0 : i32, i32
  }
  func.func @transform_7(%arg0: i32, %arg1: i32) -> (i32, i32) {
    %c0_i32 = arith.constant 0 : i32
    %c0_i32_0 = arith.constant 0 : i32
    %c0_i32_1 = arith.constant 0 : i32
    return %c0_i32, %c0_i32_0 : i32, i32
  }
  func.func @transform_8(%arg0: i32, %arg1: i32) -> (i32, i32) {
    %c0_i32 = arith.constant 0 : i32
    %c0_i32_0 = arith.constant 0 : i32
    %c0_i32_1 = arith.constant 0 : i32
    return %c0_i32, %c0_i32_0 : i32, i32
  }
  func.func @transform_9(%arg0: i32, %arg1: i32) -> (i32, i32) {
    %c0_i32 = arith.constant 0 : i32
    %c0_i32_0 = arith.constant 0 : i32
    %c0_i32_1 = arith.constant 0 : i32
    return %c0_i32, %c0_i32_0 : i32, i32
  }
  func.func @transform_10(%arg0: i32, %arg1: i32) -> (i32, i32) {
    %c0_i32 = arith.constant 0 : i32
    %c0_i32_0 = arith.constant 0 : i32
    %c0_i32_1 = arith.constant 0 : i32
    return %c0_i32, %c0_i32_0 : i32, i32
  }
  func.func @transform_11(%arg0: i32, %arg1: i32) -> (i32, i32) {
    %c0_i32 = arith.constant 0 : i32
    %c0_i32_0 = arith.constant 0 : i32
    %c0_i32_1 = arith.constant 0 : i32
    return %c0_i32, %c0_i32_0 : i32, i32
  }
  func.func @transform_12(%arg0: i32, %arg1: i32) -> (i32, i32) {
    %c0_i32 = arith.constant 0 : i32
    %c0_i32_0 = arith.constant 0 : i32
    %c0_i32_1 = arith.constant 0 : i32
    return %c0_i32, %c0_i32_0 : i32, i32
  }
  func.func @transform_13(%arg0: i32, %arg1: i32) -> (i32, i32) {
    %c0_i32 = arith.constant 0 : i32
    %c0_i32_0 = arith.constant 0 : i32
    %c0_i32_1 = arith.constant 0 : i32
    return %c0_i32, %c0_i32_0 : i32, i32
  }
  func.func @transform_14(%arg0: i32, %arg1: i32) -> (i32, i32) {
    %c0_i32 = arith.constant 0 : i32
    %c0_i32_0 = arith.constant 0 : i32
    %c0_i32_1 = arith.constant 0 : i32
    return %c0_i32, %c0_i32_0 : i32, i32
  }
  func.func @transform_15(%arg0: i32, %arg1: i32) -> (i32, i32) {
    %c0_i32 = arith.constant 0 : i32
    %c0_i32_0 = arith.constant 0 : i32
    %c0_i32_1 = arith.constant 0 : i32
    return %c0_i32, %c0_i32_0 : i32, i32
  }
  func.func @transform_16(%arg0: i32, %arg1: i32) -> (i32, i32) {
    %c0_i32 = arith.constant 0 : i32
    %c0_i32_0 = arith.constant 0 : i32
    return %arg0, %c0_i32 : i32, i32
  }
}

</mosaic_0001>

<llo_original>
// kernel: tpu_custom_call.1
$region0: #{tpu_custom_call.1}
  #allocation0 [shape = 'u32[]', space=smem, size = 0x4, offset = 0x4, fixed_abs, tag = 'smem constant byte address 0x4 - core index']
  #allocation1 [shape = 'u32[144,128]{1,0:T(1,128)}', space=vmem, size = 0x12000, scoped, tag = 'internal scratch']
  #allocation2 [shape = 'f32[8,16]{1,0:T(8,128)}', space=vmem, size = 0x1000, scoped, tag = 'scratch operand']
  %s0 = inlined_call_operand.hbm [shape: f32[8,16,256], index: 0, kind: input, shape index: {}]
  %s1 = inlined_call_operand.hbm [shape: bf16[16,128], index: 1, kind: input, shape index: {}]
  %s2 = inlined_call_operand.hbm [shape: f32[1,128], index: 2, kind: input, shape index: {}]
  %s3 = inlined_call_operand.hbm [shape: bf16[128,128], index: 3, kind: input, shape index: {}]
  %s4 = inlined_call_operand.hbm [shape: f32[1,128], index: 4, kind: input, shape index: {}]
  %s5 = inlined_call_operand.hbm [shape: f32[8,10], index: 5, kind: input, shape index: {}]
  %s6 = inlined_call_operand.hbm [shape: f32[1,10], index: 6, kind: input, shape index: {}]
  %s7 = inlined_call_operand.hbm [shape: f32[1,10], index: 7, kind: input, shape index: {}]
  %s8 = inlined_call_operand.hbm [shape: bf16[10,128], index: 8, kind: input, shape index: {}]
  %s9 = inlined_call_operand.hbm [shape: f32[1,128], index: 9, kind: input, shape index: {}]
  %s10 = inlined_call_operand.hbm [shape: bf16[128,128], index: 10, kind: input, shape index: {}]
  %s11 = inlined_call_operand.hbm [shape: f32[1,128], index: 11, kind: input, shape index: {}]
  %s12 = inlined_call_operand.hbm [shape: bf16[128,128], index: 12, kind: input, shape index: {}]
  %s13 = inlined_call_operand.hbm [shape: f32[1,128], index: 13, kind: input, shape index: {}]
  %s14 = inlined_call_operand.hbm [shape: f32[1,128], index: 14, kind: input, shape index: {}]
  %s15 = inlined_call_operand.hbm [shape: f32[1,128], index: 15, kind: input, shape index: {}]
  %s16 = inlined_call_operand.hbm [shape: f32[8,128], index: 16, kind: output, shape index: {}]
  %s17 = sld [smem:[#allocation0]]
  $region146: #{tpu_custom_call.1} parent=0
    _
  %s19 = ssub.s32 1, %s17
  %s20 = scalar_select 0, %s19, %s17
  $region1: #{tpu_custom_call.1} parent=0
    #allocation3 [shape = 'u8[131072]{0}', space=vmem, size = 0x20000, scoped, tag = 'input window, operand 0, single buffered']
    #allocation4 [shape = 's32[1]{0}', space=sflag, size = 0x4, scoped, tag = 'scoped memory for tpu_custom_call.1']
    #allocation5 [shape = 's32[1]{0}', space=sflag, size = 0x4, scoped, tag = 'scoped memory for tpu_custom_call.1']
    #allocation6 [shape = 'u8[4096]{0}', space=vmem, size = 0x1000, scoped, tag = 'input window, operand 1, single buffered']
    #allocation7 [shape = 's32[1]{0}', space=sflag, size = 0x4, scoped, tag = 'scoped memory for tpu_custom_call.1']
    #allocation8 [shape = 'u8[512]{0}', space=vmem, size = 0x400, scoped, tag = 'input window, operand 2, single buffered']
    #allocation9 [shape = 'u8[32768]{0}', space=vmem, size = 0x8000, scoped, tag = 'input window, operand 3, single buffered']
    #allocation10 [shape = 's32[1]{0}', space=sflag, size = 0x4, scoped, tag = 'scoped memory for tpu_custom_call.1']
    #allocation11 [shape = 'u8[512]{0}', space=vmem, size = 0x400, scoped, tag = 'input window, operand 4, single buffered']
    #allocation12 [shape = 'u8[4096]{0}', space=vmem, size = 0x1000, scoped, tag = 'input window, operand 5, single buffered']
    #allocation13 [shape = 's32[1]{0}', space=sflag, size = 0x4, scoped, tag = 'scoped memory for tpu_custom_call.1']
    #allocation14 [shape = 'u8[512]{0}', space=vmem, size = 0x400, scoped, tag = 'input window, operand 6, single buffered']
    #allocation15 [shape = 'u8[512]{0}', space=vmem, size = 0x400, scoped, tag = 'input window, operand 7, single buffered']
    #allocation16 [shape = 's32[1]{0}', space=sflag, size = 0x4, scoped, tag = 'scoped memory for tpu_custom_call.1']
    #allocation17 [shape = 'u8[4096]{0}', space=vmem, size = 0x1000, scoped, tag = 'input window, operand 8, single buffered']
    #allocation18 [shape = 'u8[512]{0}', space=vmem, size = 0x400, scoped, tag = 'input window, operand 9, single buffered']
    #allocation19 [shape = 's32[1]{0}', space=sflag, size = 0x4, scoped, tag = 'scoped memory for tpu_custom_call.1']
    #allocation20 [shape = 'u8[32768]{0}', space=vmem, size = 0x8000, scoped, tag = 'input window, operand 10, single buffered']
    #allocation21 [shape = 'u8[512]{0}', space=vmem, size = 0x400, scoped, tag = 'input window, operand 11, single buffered']
    #allocation22 [shape = 's32[1]{0}', space=sflag, size = 0x4, scoped, tag = 'scoped memory for tpu_custom_call.1']
    #allocation23 [shape = 'u8[32768]{0}', space=vmem, size = 0x8000, scoped, tag = 'input window, operand 12, single buffered']
    #allocation24 [shape = 'u8[512]{0}', space=vmem, size = 0x400, scoped, tag = 'input window, operand 13, single buffered']
    #allocation25 [shape = 's32[1]{0}', space=sflag, size = 0x4, scoped, tag = 'scoped memory for tpu_custom_call.1']
    #allocation26 [shape = 'u8[512]{0}', space=vmem, size = 0x400, scoped, tag = 'input window, operand 14, single buffered']
    #allocation27 [shape = 'u8[512]{0}', space=vmem, size = 0x400, scoped, tag = 'input window, operand 15, single buffered']
    #allocation28 [shape = 's32[1]{0}', space=sflag, size = 0x4, scoped, tag = 'scoped memory for tpu_custom_call.1']
    #allocation29 [shape = 'u8[4096]{0}', space=vmem, size = 0x1000, scoped, tag = 'output window, operand 0, single buffered']
    %21 = vsyncpa [#allocation4], 0
    %22 = vsyncpa [#allocation7], 0
    %23 = vsyncpa [#allocation10], 0
    %24 = vsyncpa [#allocation13], 0
    %25 = vsyncpa [#allocation16], 0
    %26 = vsyncpa [#allocation19], 0
    %27 = vsyncpa [#allocation22], 0
    %28 = vsyncpa [#allocation25], 0
    %29 = vsyncpa [#allocation28], 0
    %30 = vsyncpa [#allocation5], 0
    // Predicated region
    $region2: #{tpu_custom_call.1} parent=1 // pred_check
      _
    $region3: #{tpu_custom_call.1} parent=1 // pred_check_branch
      %32 = sbr.rel (0) target = $region5
    $region4: #{tpu_custom_call.1} parent=1 // pred_region
      %s34 = ssub.s32 4096, 4096
      %35 = vsyncadd [#allocation4], %s34
      %s36 = sshll.u32 [#allocation3], 4
      %s37 = int_to_ptr.vmem [resolvable:$true] %s36
      %42 = dma.hbm_to_vmem [thread:$0]  %s0, 4096, %s37, [#allocation4], 256, 256, 16
    $region5: #{tpu_custom_call.1} parent=1 // pred_fallthru
      _
    // Predicated region
    $region6: #{tpu_custom_call.1} parent=1 // pred_check
      _
    $region7: #{tpu_custom_call.1} parent=1 // pred_check_branch
      %44 = sbr.rel (0) target = $region9
    $region8: #{tpu_custom_call.1} parent=1 // pred_region
      %s46 = ssub.s32 128, 128
      %47 = vsyncadd [#allocation7], %s46
      %s48 = sshll.u32 [#allocation6], 4
      %s49 = int_to_ptr.vmem [resolvable:$true] %s48
      %54 = dma.hbm_to_vmem [thread:$0]  %s1, 128, %s49, [#allocation7], 64, 64, 4
    $region9: #{tpu_custom_call.1} parent=1 // pred_fallthru
      _
    // Predicated region
    $region10: #{tpu_custom_call.1} parent=1 // pred_check
      _
    $region11: #{tpu_custom_call.1} parent=1 // pred_check_branch
      %56 = sbr.rel (0) target = $region13
    $region12: #{tpu_custom_call.1} parent=1 // pred_region
      %s58 = ssub.s32 16, 16
      %59 = vsyncadd [#allocation7], %s58
      %s61 = sshll.u32 [#allocation8], 4
      %s62 = int_to_ptr.vmem [resolvable:$true] %s61
      %64 = dma.hbm_to_vmem [thread:$0]  %s2, 16, %s62, [#allocation7]
    $region13: #{tpu_custom_call.1} parent=1 // pred_fallthru
      _
    // Predicated region
    $region14: #{tpu_custom_call.1} parent=1 // pred_check
      _
    $region15: #{tpu_custom_call.1} parent=1 // pred_check_branch
      %66 = sbr.rel (0) target = $region17
    $region16: #{tpu_custom_call.1} parent=1 // pred_region
      %s68 = ssub.s32 1024, 1024
      %69 = vsyncadd [#allocation10], %s68
      %s70 = sshll.u32 [#allocation9], 4
      %s71 = int_to_ptr.vmem [resolvable:$true] %s70
      %76 = dma.hbm_to_vmem [thread:$0]  %s3, 1024, %s71, [#allocation10], 64, 64, 4
    $region17: #{tpu_custom_call.1} parent=1 // pred_fallthru
      _
    // Predicated region
    $region18: #{tpu_custom_call.1} parent=1 // pred_check
      _
    $region19: #{tpu_custom_call.1} parent=1 // pred_check_branch
      %78 = sbr.rel (0) target = $region21
    $region20: #{tpu_custom_call.1} parent=1 // pred_region
      %s80 = ssub.s32 16, 16
      %81 = vsyncadd [#allocation10], %s80
      %s83 = sshll.u32 [#allocation11], 4
      %s84 = int_to_ptr.vmem [resolvable:$true] %s83
      %86 = dma.hbm_to_vmem [thread:$0]  %s4, 16, %s84, [#allocation10]
    $region21: #{tpu_custom_call.1} parent=1 // pred_fallthru
      _
    // Predicated region
    $region22: #{tpu_custom_call.1} parent=1 // pred_check
      _
    $region23: #{tpu_custom_call.1} parent=1 // pred_check_branch
      %88 = sbr.rel (0) target = $region25
    $region24: #{tpu_custom_call.1} parent=1 // pred_region
      %s90 = ssub.s32 128, 128
      %91 = vsyncadd [#allocation13], %s90
      %s93 = sshll.u32 [#allocation12], 4
      %s94 = int_to_ptr.vmem [resolvable:$true] %s93
      %96 = dma.hbm_to_vmem [thread:$0]  %s5, 128, %s94, [#allocation13]
    $region25: #{tpu_custom_call.1} parent=1 // pred_fallthru
      _
    // Predicated region
    $region26: #{tpu_custom_call.1} parent=1 // pred_check
      _
    $region27: #{tpu_custom_call.1} parent=1 // pred_check_branch
      %98 = sbr.rel (0) target = $region29
    $region28: #{tpu_custom_call.1} parent=1 // pred_region
      %s100 = ssub.s32 16, 16
      %101 = vsyncadd [#allocation13], %s100
      %s103 = sshll.u32 [#allocation14], 4
      %s104 = int_to_ptr.vmem [resolvable:$true] %s103
      %106 = dma.hbm_to_vmem [thread:$0]  %s6, 16, %s104, [#allocation13]
    $region29: #{tpu_custom_call.1} parent=1 // pred_fallthru
      _
    // Predicated region
    $region30: #{tpu_custom_call.1} parent=1 // pred_check
      _
    $region31: #{tpu_custom_call.1} parent=1 // pred_check_branch
      %108 = sbr.rel (0) target = $region33
    $region32: #{tpu_custom_call.1} parent=1 // pred_region
      %s110 = ssub.s32 16, 16
      %111 = vsyncadd [#allocation16], %s110
      %s113 = sshll.u32 [#allocation15], 4
      %s114 = int_to_ptr.vmem [resolvable:$true] %s113
      %116 = dma.hbm_to_vmem [thread:$0]  %s7, 16, %s114, [#allocation16]
    $region33: #{tpu_custom_call.1} parent=1 // pred_fallthru
      _
    // Predicated region
    $region34: #{tpu_custom_call.1} parent=1 // pred_check
      _
    $region35: #{tpu_custom_call.1} parent=1 // pred_check_branch
      %118 = sbr.rel (0) target = $region37
    $region36: #{tpu_custom_call.1} parent=1 // pred_region
      %s120 = ssub.s32 128, 128
      %121 = vsyncadd [#allocation16], %s120
      %s122 = sshll.u32 [#allocation17], 4
      %s123 = int_to_ptr.vmem [resolvable:$true] %s122
      %128 = dma.hbm_to_vmem [thread:$0]  %s8, 128, %s123, [#allocation16], 64, 64, 4
    $region37: #{tpu_custom_call.1} parent=1 // pred_fallthru
      _
    // Predicated region
    $region38: #{tpu_custom_call.1} parent=1 // pred_check
      _
    $region39: #{tpu_custom_call.1} parent=1 // pred_check_branch
      %130 = sbr.rel (0) target = $region41
    $region40: #{tpu_custom_call.1} parent=1 // pred_region
      %s132 = ssub.s32 16, 16
      %133 = vsyncadd [#allocation19], %s132
      %s135 = sshll.u32 [#allocation18], 4
      %s136 = int_to_ptr.vmem [resolvable:$true] %s135
      %138 = dma.hbm_to_vmem [thread:$0]  %s9, 16, %s136, [#allocation19]
    $region41: #{tpu_custom_call.1} parent=1 // pred_fallthru
      _
    // Predicated region
    $region42: #{tpu_custom_call.1} parent=1 // pred_check
      _
    $region43: #{tpu_custom_call.1} parent=1 // pred_check_branch
      %140 = sbr.rel (0) target = $region45
    $region44: #{tpu_custom_call.1} parent=1 // pred_region
      %s142 = ssub.s32 1024, 1024
      %143 = vsyncadd [#allocation19], %s142
      %s144 = sshll.u32 [#allocation20], 4
      %s145 = int_to_ptr.vmem [resolvable:$true] %s144
      %150 = dma.hbm_to_vmem [thread:$0]  %s10, 1024, %s145, [#allocation19], 64, 64, 4
    $region45: #{tpu_custom_call.1} parent=1 // pred_fallthru
      _
    // Predicated region
    $region46: #{tpu_custom_call.1} parent=1 // pred_check
      _
    $region47: #{tpu_custom_call.1} parent=1 // pred_check_branch
      %152 = sbr.rel (0) target = $region49
    $region48: #{tpu_custom_call.1} parent=1 // pred_region
      %s154 = ssub.s32 16, 16
      %155 = vsyncadd [#allocation22], %s154
      %s157 = sshll.u32 [#allocation21], 4
      %s158 = int_to_ptr.vmem [resolvable:$true] %s157
      %160 = dma.hbm_to_vmem [thread:$0]  %s11, 16, %s158, [#allocation22]
    $region49: #{tpu_custom_call.1} parent=1 // pred_fallthru
      _
    // Predicated region
    $region50: #{tpu_custom_call.1} parent=1 // pred_check
      _
    $region51: #{tpu_custom_call.1} parent=1 // pred_check_branch
      %162 = sbr.rel (0) target = $region53
    $region52: #{tpu_custom_call.1} parent=1 // pred_region
      %s164 = ssub.s32 1024, 1024
      %165 = vsyncadd [#allocation22], %s164
      %s166 = sshll.u32 [#allocation23], 4
      %s167 = int_to_ptr.vmem [resolvable:$true] %s166
      %172 = dma.hbm_to_vmem [thread:$0]  %s12, 1024, %s167, [#allocation22], 64, 64, 4
    $region53: #{tpu_custom_call.1} parent=1 // pred_fallthru
      _
    // Predicated region
    $region54: #{tpu_custom_call.1} parent=1 // pred_check
      _
    $region55: #{tpu_custom_call.1} parent=1 // pred_check_branch
      %174 = sbr.rel (0) target = $region57
    $region56: #{tpu_custom_call.1} parent=1 // pred_region
      %s176 = ssub.s32 16, 16
      %177 = vsyncadd [#allocation25], %s176
      %s179 = sshll.u32 [#allocation24], 4
      %s180 = int_to_ptr.vmem [resolvable:$true] %s179
      %182 = dma.hbm_to_vmem [thread:$0]  %s13, 16, %s180, [#allocation25]
    $region57: #{tpu_custom_call.1} parent=1 // pred_fallthru
      _
    // Predicated region
    $region58: #{tpu_custom_call.1} parent=1 // pred_check
      _
    $region59: #{tpu_custom_call.1} parent=1 // pred_check_branch
      %184 = sbr.rel (0) target = $region61
    $region60: #{tpu_custom_call.1} parent=1 // pred_region
      %s186 = ssub.s32 16, 16
      %187 = vsyncadd [#allocation25], %s186
      %s189 = sshll.u32 [#allocation26], 4
      %s190 = int_to_ptr.vmem [resolvable:$true] %s189
      %192 = dma.hbm_to_vmem [thread:$0]  %s14, 16, %s190, [#allocation25]
    $region61: #{tpu_custom_call.1} parent=1 // pred_fallthru
      _
    // Predicated region
    $region62: #{tpu_custom_call.1} parent=1 // pred_check
      _
    $region63: #{tpu_custom_call.1} parent=1 // pred_check_branch
      %194 = sbr.rel (0) target = $region65
    $region64: #{tpu_custom_call.1} parent=1 // pred_region
      %s196 = ssub.s32 16, 16
      %197 = vsyncadd [#allocation28], %s196
      %s199 = sshll.u32 [#allocation27], 4
      %s200 = int_to_ptr.vmem [resolvable:$true] %s199
      %202 = dma.hbm_to_vmem [thread:$0]  %s15, 16, %s200, [#allocation28]
    $region65: #{tpu_custom_call.1} parent=1 // pred_fallthru
      _
    // Predicated region
    $region66: #{tpu_custom_call.1} parent=1 // pred_check
      _
    $region67: #{tpu_custom_call.1} parent=1 // pred_check_branch
      %204 = sbr.rel (0) target = $region69
    $region68: #{tpu_custom_call.1} parent=1 // pred_region
      %205 = dma.done [#allocation4], 4096
    $region69: #{tpu_custom_call.1} parent=1 // pred_fallthru
      _
    // Predicated region
    $region70: #{tpu_custom_call.1} parent=1 // pred_check
      _
    $region71: #{tpu_custom_call.1} parent=1 // pred_check_branch
      %207 = sbr.rel (0) target = $region73
    $region72: #{tpu_custom_call.1} parent=1 // pred_region
      %208 = dma.done [#allocation7], 128
    $region73: #{tpu_custom_call.1} parent=1 // pred_fallthru
      _
    // Predicated region
    $region74: #{tpu_custom_call.1} parent=1 // pred_check
      _
    $region75: #{tpu_custom_call.1} parent=1 // pred_check_branch
      %210 = sbr.rel (0) target = $region77
    $region76: #{tpu_custom_call.1} parent=1 // pred_region
      %211 = dma.done [#allocation7], 16
    $region77: #{tpu_custom_call.1} parent=1 // pred_fallthru
      _
    // Predicated region
    $region78: #{tpu_custom_call.1} parent=1 // pred_check
      _
    $region79: #{tpu_custom_call.1} parent=1 // pred_check_branch
      %213 = sbr.rel (0) target = $region81
    $region80: #{tpu_custom_call.1} parent=1 // pred_region
      %214 = dma.done [#allocation10], 1024
    $region81: #{tpu_custom_call.1} parent=1 // pred_fallthru
      _
    // Predicated region
    $region82: #{tpu_custom_call.1} parent=1 // pred_check
      _
    $region83: #{tpu_custom_call.1} parent=1 // pred_check_branch
      %216 = sbr.rel (0) target = $region85
    $region84: #{tpu_custom_call.1} parent=1 // pred_region
      %217 = dma.done [#allocation10], 16
    $region85: #{tpu_custom_call.1} parent=1 // pred_fallthru
      _
    // Predicated region
    $region86: #{tpu_custom_call.1} parent=1 // pred_check
      _
    $region87: #{tpu_custom_call.1} parent=1 // pred_check_branch
      %219 = sbr.rel (0) target = $region89
    $region88: #{tpu_custom_call.1} parent=1 // pred_region
      %220 = dma.done [#allocation13], 128
    $region89: #{tpu_custom_call.1} parent=1 // pred_fallthru
      _
    // Predicated region
    $region90: #{tpu_custom_call.1} parent=1 // pred_check
      _
    $region91: #{tpu_custom_call.1} parent=1 // pred_check_branch
      %222 = sbr.rel (0) target = $region93
    $region92: #{tpu_custom_call.1} parent=1 // pred_region
      %223 = dma.done [#allocation13], 16
    $region93: #{tpu_custom_call.1} parent=1 // pred_fallthru
      _
    // Predicated region
    $region94: #{tpu_custom_call.1} parent=1 // pred_check
      _
    $region95: #{tpu_custom_call.1} parent=1 // pred_check_branch
      %225 = sbr.rel (0) target = $region97
    $region96: #{tpu_custom_call.1} parent=1 // pred_region
      %226 = dma.done [#allocation16], 16
    $region97: #{tpu_custom_call.1} parent=1 // pred_fallthru
      _
    // Predicated region
    $region98: #{tpu_custom_call.1} parent=1 // pred_check
      _
    $region99: #{tpu_custom_call.1} parent=1 // pred_check_branch
      %228 = sbr.rel (0) target = $region101
    $region100: #{tpu_custom_call.1} parent=1 // pred_region
      %229 = dma.done [#allocation16], 128
    $region101: #{tpu_custom_call.1} parent=1 // pred_fallthru
      _
    // Predicated region
    $region102: #{tpu_custom_call.1} parent=1 // pred_check
      _
    $region103: #{tpu_custom_call.1} parent=1 // pred_check_branch
      %231 = sbr.rel (0) target = $region105
    $region104: #{tpu_custom_call.1} parent=1 // pred_region
      %232 = dma.done [#allocation19], 16
    $region105: #{tpu_custom_call.1} parent=1 // pred_fallthru
      _
    // Predicated region
    $region106: #{tpu_custom_call.1} parent=1 // pred_check
      _
    $region107: #{tpu_custom_call.1} parent=1 // pred_check_branch
      %234 = sbr.rel (0) target = $region109
    $region108: #{tpu_custom_call.1} parent=1 // pred_region
      %235 = dma.done [#allocation19], 1024
    $region109: #{tpu_custom_call.1} parent=1 // pred_fallthru
      _
    // Predicated region
    $region110: #{tpu_custom_call.1} parent=1 // pred_check
      _
    $region111: #{tpu_custom_call.1} parent=1 // pred_check_branch
      %237 = sbr.rel (0) target = $region113
    $region112: #{tpu_custom_call.1} parent=1 // pred_region
      %238 = dma.done [#allocation22], 16
    $region113: #{tpu_custom_call.1} parent=1 // pred_fallthru
      _
    // Predicated region
    $region114: #{tpu_custom_call.1} parent=1 // pred_check
      _
    $region115: #{tpu_custom_call.1} parent=1 // pred_check_branch
      %240 = sbr.rel (0) target = $region117
    $region116: #{tpu_custom_call.1} parent=1 // pred_region
      %241 = dma.done [#allocation22], 1024
    $region117: #{tpu_custom_call.1} parent=1 // pred_fallthru
      _
    // Predicated region
    $region118: #{tpu_custom_call.1} parent=1 // pred_check
      _
    $region119: #{tpu_custom_call.1} parent=1 // pred_check_branch
      %243 = sbr.rel (0) target = $region121
    $region120: #{tpu_custom_call.1} parent=1 // pred_region
      %244 = dma.done [#allocation25], 16
    $region121: #{tpu_custom_call.1} parent=1 // pred_fallthru
      _
    // Predicated region
    $region122: #{tpu_custom_call.1} parent=1 // pred_check
      _
    $region123: #{tpu_custom_call.1} parent=1 // pred_check_branch
      %246 = sbr.rel (0) target = $region125
    $region124: #{tpu_custom_call.1} parent=1 // pred_region
      %247 = dma.done [#allocation25], 16
    $region125: #{tpu_custom_call.1} parent=1 // pred_fallthru
      _
    // Predicated region
    $region126: #{tpu_custom_call.1} parent=1 // pred_check
      _
    $region127: #{tpu_custom_call.1} parent=1 // pred_check_branch
      %249 = sbr.rel (0) target = $region129
    $region128: #{tpu_custom_call.1} parent=1 // pred_region
      %250 = dma.done [#allocation28], 16
    $region129: #{tpu_custom_call.1} parent=1 // pred_fallthru
      _
    %p252 = scmp.eq.s32.totalorder 0, 0
    // Predicated region
    $region130: #{tpu_custom_call.1} parent=1 // pred_check
      %p253 = pneg %p252
    $region131: #{tpu_custom_call.1} parent=1 // pred_check_branch
      %255 = sbr.rel (%p253) target = $region133
    $region132: #{tpu_custom_call.1} parent=1 // pred_region
      %vm256 = vcmask 130048
      %257 = vst.msk [vmem:[#allocation2] sm:$0xff] %vm256, 0.0
    $region133: #{tpu_custom_call.1} parent=1 // pred_fallthru
      _
    %v258 = vld [vmem:[#allocation2] sm:$0xff]
    %v259 = vld [vmem:[#allocation3] sm:$0xff]
    %v260 = vld [vmem:[#allocation3 + $0x8] sm:$0xff]
    %v261 = vld [vmem:[#allocation3 + $0x10] sm:$0xff]
    %v262 = vld [vmem:[#allocation3 + $0x18] sm:$0xff]
    %v263 = vld [vmem:[#allocation3 + $0x20] sm:$0xff]
    %v264 = vld [vmem:[#allocation3 + $0x28] sm:$0xff]
    %v265 = vld [vmem:[#allocation3 + $0x30] sm:$0xff]
    %v266 = vld [vmem:[#allocation3 + $0x38] sm:$0xff]
    %v267 = vld [vmem:[#allocation3 + $0x40] sm:$0xff]
    %v268 = vld [vmem:[#allocation3 + $0x48] sm:$0xff]
    %v269 = vld [vmem:[#allocation3 + $0x50] sm:$0xff]
    %v270 = vld [vmem:[#allocation3 + $0x58] sm:$0xff]
    %v271 = vld [vmem:[#allocation3 + $0x60] sm:$0xff]
    %v272 = vld [vmem:[#allocation3 + $0x68] sm:$0xff]
    %v273 = vld [vmem:[#allocation3 + $0x70] sm:$0xff]
    %v274 = vld [vmem:[#allocation3 + $0x78] sm:$0xff]
    %v275 = vld [vmem:[#allocation3 + $0x80] sm:$0xff]
    %v276 = vld [vmem:[#allocation3 + $0x88] sm:$0xff]
    %v277 = vld [vmem:[#allocation3 + $0x90] sm:$0xff]
    %v278 = vld [vmem:[#allocation3 + $0x98] sm:$0xff]
    %v279 = vld [vmem:[#allocation3 + $0xa0] sm:$0xff]
    %v280 = vld [vmem:[#allocation3 + $0xa8] sm:$0xff]
    %v281 = vld [vmem:[#allocation3 + $0xb0] sm:$0xff]
    %v282 = vld [vmem:[#allocation3 + $0xb8] sm:$0xff]
    %v283 = vld [vmem:[#allocation3 + $0xc0] sm:$0xff]
    %v284 = vld [vmem:[#allocation3 + $0xc8] sm:$0xff]
    %v285 = vld [vmem:[#allocation3 + $0xd0] sm:$0xff]
    %v286 = vld [vmem:[#allocation3 + $0xd8] sm:$0xff]
    %v287 = vld [vmem:[#allocation3 + $0xe0] sm:$0xff]
    %v288 = vld [vmem:[#allocation3 + $0xe8] sm:$0xff]
    %v289 = vld [vmem:[#allocation3 + $0xf0] sm:$0xff]
    %v290 = vld [vmem:[#allocation3 + $0xf8] sm:$0xff]
    %v291 = vadd.f32 %v259, %v260
    %292 = vadd.xlane.f32.xlu0 %v291
    %v293 = vpop.xlane.xlu0 %292
    %v294 = vadd.f32 %v261, %v262
    %295 = vadd.xlane.f32.xlu0 %v294
    %v296 = vpop.xlane.xlu0 %295
    %v297 = vadd.f32 %v263, %v264
    %298 = vadd.xlane.f32.xlu0 %v297
    %v299 = vpop.xlane.xlu0 %298
    %v300 = vadd.f32 %v265, %v266
    %301 = vadd.xlane.f32.xlu0 %v300
    %v302 = vpop.xlane.xlu0 %301
    %v303 = vadd.f32 %v267, %v268
    %304 = vadd.xlane.f32.xlu0 %v303
    %v305 = vpop.xlane.xlu0 %304
    %v306 = vadd.f32 %v269, %v270
    %307 = vadd.xlane.f32.xlu0 %v306
    %v308 = vpop.xlane.xlu0 %307
    %v309 = vadd.f32 %v271, %v272
    %310 = vadd.xlane.f32.xlu0 %v309
    %v311 = vpop.xlane.xlu0 %310
    %v312 = vadd.f32 %v273, %v274
    %313 = vadd.xlane.f32.xlu0 %v312
    %v314 = vpop.xlane.xlu0 %313
    %v315 = vadd.f32 %v275, %v276
    %316 = vadd.xlane.f32.xlu0 %v315
    %v317 = vpop.xlane.xlu0 %316
    %v318 = vadd.f32 %v277, %v278
    %319 = vadd.xlane.f32.xlu0 %v318
    %v320 = vpop.xlane.xlu0 %319
    %v321 = vadd.f32 %v279, %v280
    %322 = vadd.xlane.f32.xlu0 %v321
    %v323 = vpop.xlane.xlu0 %322
    %v324 = vadd.f32 %v281, %v282
    %325 = vadd.xlane.f32.xlu0 %v324
    %v326 = vpop.xlane.xlu0 %325
    %v327 = vadd.f32 %v283, %v284
    %328 = vadd.xlane.f32.xlu0 %v327
    %v329 = vpop.xlane.xlu0 %328
    %v330 = vadd.f32 %v285, %v286
    %331 = vadd.xlane.f32.xlu0 %v330
    %v332 = vpop.xlane.xlu0 %331
    %v333 = vadd.f32 %v287, %v288
    %334 = vadd.xlane.f32.xlu0 %v333
    %v335 = vpop.xlane.xlu0 %334
    %v336 = vadd.f32 %v289, %v290
    %337 = vadd.xlane.f32.xlu0 %v336
    %v338 = vpop.xlane.xlu0 %337
    %v355 = vlaneseq
    %v356 = vand.u32 %v355, 127
    %v357 = vlaneseq
    %v358 = vshrl.u32 %v357, 7
    %v359 = vsub.s32 %v356, %v358
    %v360 = vrot.slane %v293, %v359
    %v361 = vadd.s32 %v356, 4294967288
    %v362 = vlaneseq
    %v363 = vshrl.u32 %v362, 7
    %v364 = vsub.s32 %v361, %v363
    %v365 = vrot.slane %v296, %v364
    %vm366 = vcmask 130112
    %v367 = vsel %vm366, %v365, %v360
    %v368 = vlaneseq
    %v369 = vshrl.u32 %v368, 7
    %v370 = vsub.s32 %v356, %v369
    %v371 = vrot.slane %v299, %v370
    %v372 = vlaneseq
    %v373 = vshrl.u32 %v372, 7
    %v374 = vsub.s32 %v361, %v373
    %v375 = vrot.slane %v302, %v374
    %v376 = vsel %vm366, %v375, %v371
    %v377 = vlaneseq
    %v378 = vshrl.u32 %v377, 7
    %v379 = vsub.s32 %v356, %v378
    %v380 = vrot.slane %v305, %v379
    %v381 = vlaneseq
    %v382 = vshrl.u32 %v381, 7
    %v383 = vsub.s32 %v361, %v382
    %v384 = vrot.slane %v308, %v383
    %v385 = vsel %vm366, %v384, %v380
    %v386 = vlaneseq
    %v387 = vshrl.u32 %v386, 7
    %v388 = vsub.s32 %v356, %v387
    %v389 = vrot.slane %v311, %v388
    %v390 = vlaneseq
    %v391 = vshrl.u32 %v390, 7
    %v392 = vsub.s32 %v361, %v391
    %v393 = vrot.slane %v314, %v392
    %v394 = vsel %vm366, %v393, %v389
    %v395 = vlaneseq
    %v396 = vshrl.u32 %v395, 7
    %v397 = vsub.s32 %v356, %v396
    %v398 = vrot.slane %v317, %v397
    %v399 = vlaneseq
    %v400 = vshrl.u32 %v399, 7
    %v401 = vsub.s32 %v361, %v400
    %v402 = vrot.slane %v320, %v401
    %v403 = vsel %vm366, %v402, %v398
    %v404 = vlaneseq
    %v405 = vshrl.u32 %v404, 7
    %v406 = vsub.s32 %v356, %v405
    %v407 = vrot.slane %v323, %v406
    %v408 = vlaneseq
    %v409 = vshrl.u32 %v408, 7
    %v410 = vsub.s32 %v361, %v409
    %v411 = vrot.slane %v326, %v410
    %v412 = vsel %vm366, %v411, %v407
    %v413 = vlaneseq
    %v414 = vshrl.u32 %v413, 7
    %v415 = vsub.s32 %v356, %v414
    %v416 = vrot.slane %v329, %v415
    %v417 = vlaneseq
    %v418 = vshrl.u32 %v417, 7
    %v419 = vsub.s32 %v361, %v418
    %v420 = vrot.slane %v332, %v419
    %v421 = vsel %vm366, %v420, %v416
    %v422 = vlaneseq
    %v423 = vshrl.u32 %v422, 7
    %v424 = vsub.s32 %v356, %v423
    %v425 = vrot.slane %v335, %v424
    %v426 = vlaneseq
    %v427 = vshrl.u32 %v426, 7
    %v428 = vsub.s32 %v361, %v427
    %v429 = vrot.slane %v338, %v428
    %v430 = vsel %vm366, %v429, %v425
    %vm431 = vcmask 1041409
    %v432 = vsel %vm431, %v376, %v367
    %vm433 = vcmask 1042434
    %v434 = vsel %vm433, %v385, %v432
    %vm435 = vcmask 1043459
    %v436 = vsel %vm435, %v394, %v434
    %vm437 = vcmask 1044484
    %v438 = vsel %vm437, %v403, %v436
    %vm439 = vcmask 1045509
    %v440 = vsel %vm439, %v412, %v438
    %vm441 = vcmask 1046534
    %v442 = vsel %vm441, %v421, %v440
    %vm443 = vcmask 1047559
    %v444 = vsel %vm443, %v430, %v442
    %v446 = vadd.f32 %v258, %v444
    %vm447 = vcmask 130048
    %448 = vst.msk [vmem:[#allocation2] sm:$0xff] %vm447, %v446
    // Predicated region
    $region134: #{tpu_custom_call.1} parent=1 // pred_check
      %p449 = pneg %p252
    $region135: #{tpu_custom_call.1} parent=1 // pred_check_branch
      %451 = sbr.rel (%p449) target = $region137
    $region136: #{tpu_custom_call.1} parent=1 // pred_region
      %v452 = vld [vmem:[#allocation2] sm:$0xff]
      %v453 = vpack.c.bf16 %v452, %v452
      %v454 = vld [vmem:[#allocation6] sm:$0xf]
      %v455 = vld [vmem:[#allocation6 + $0x4] sm:$0xf]
      %v456 = vld [vmem:[#allocation8] sm:$0x1]
      %v458 = vlaneseq
      %v459 = vshrl.u32 %v458, 7
      %v460 = vsub.s32 0, %v459
      %v461 = vrot.slane %v456, %v460
      %v465 = vunpack.c.l.b16 %v454
      %v466 = vunpack.c.l.b16 %v455
      %v467 = vpack.c.b16 %v466, %v465
      %v470 = vsel %vm447, %v453, 0
      %472 = vmatprep.subr.bf16.mxu0 0
      %473 = vmatpush1.bf16.msra.mxu0 %v467
      %474 = vmatprep.subr.bf16.mxu0 0
      %475 = vmatpush1.bf16.msra.mxu0 0
      %476 = vmatprep.subr.bf16.mxu0 0
      %477 = vmatpush1.bf16.msra.mxu0 0
      %478 = vmatprep.subr.bf16.mxu0 0
      %479 = vmatpush1.bf16.msra.mxu0 0
      %480 = vmatprep.subr.bf16.mxu0 0
      %481 = vmatpush1.bf16.msra.mxu0 0
      %482 = vmatprep.subr.bf16.mxu0 0
      %483 = vmatpush1.bf16.msra.mxu0 0
      %484 = vmatprep.subr.bf16.mxu0 0
      %485 = vmatpush1.bf16.msra.mxu0 0
      %486 = vmatprep.subr.bf16.mxu0 0
      %487 = vmatpush1.bf16.msra.mxu0 0
      %488 = vmatprep.subr.bf16.mxu0 0
      %489 = vmatpush1.bf16.msra.mxu0 0
      %490 = vmatprep.subr.bf16.mxu0 0
      %491 = vmatpush1.bf16.msra.mxu0 0
      %492 = vmatprep.subr.bf16.mxu0 0
      %493 = vmatpush1.bf16.msra.mxu0 0
      %494 = vmatprep.subr.bf16.mxu0 0
      %495 = vmatpush1.bf16.msra.mxu0 0
      %496 = vmatprep.subr.bf16.mxu0 0
      %497 = vmatpush1.bf16.msra.mxu0 0
      %498 = vmatprep.subr.bf16.mxu0 0
      %499 = vmatpush1.bf16.msra.mxu0 0
      %500 = vmatprep.subr.bf16.mxu0 0
      %501 = vmatpush1.bf16.msra.mxu0 0
      %502 = vmatprep.subr.bf16.mxu0 0
      %503 = vmatpush1.bf16.msra.mxu0 0
      %504 = vmatprep.mubr.bf16.mxu0 0
      %505 = vmatmul.mubr.bf16.gmra.mrb[0].mxu0 %v470
      %v506 = vpop.f32.mrb[0].mxu0
      %v507 = vadd.f32 %v461, %v506
      %v508 = vpop.f32.mrb[0].mxu0
      %v509 = vpop.f32.mrb[0].mxu0
      %v510 = vpop.f32.mrb[0].mxu0
      %511 = vdwg.mxu0
      %v512 = vmul.f32 %v507, %v507
      %v513 = vmul.f32 %v507, %v512
      %v514 = vmul.f32 %v513, 0.044715
      %v515 = vadd.f32 %v507, %v514
      %v516 = vmul.f32 %v515, 0.7978846
      %v517 = vtanh.pop %v516
      %v518 = vadd.f32 %v517, 1.0
      %v519 = vmul.f32 %v518, 0.5
      %v520 = vmul.f32 %v507, %v519
      %v521 = vpack.c.bf16 %v520, %v520
      %v522 = vld [vmem:[#allocation9] sm:$0xf]
      %v523 = vld [vmem:[#allocation9 + $0x4] sm:$0xf]
      %v524 = vld [vmem:[#allocation9 + $0x8] sm:$0xf]
      %v525 = vld [vmem:[#allocation9 + $0xc] sm:$0xf]
      %v526 = vld [vmem:[#allocation9 + $0x10] sm:$0xf]
      %v527 = vld [vmem:[#allocation9 + $0x14] sm:$0xf]
      %v528 = vld [vmem:[#allocation9 + $0x18] sm:$0xf]
      %v529 = vld [vmem:[#allocation9 + $0x1c] sm:$0xf]
      %v530 = vld [vmem:[#allocation9 + $0x20] sm:$0xf]
      %v531 = vld [vmem:[#allocation9 + $0x24] sm:$0xf]
      %v532 = vld [vmem:[#allocation9 + $0x28] sm:$0xf]
      %v533 = vld [vmem:[#allocation9 + $0x2c] sm:$0xf]
      %v534 = vld [vmem:[#allocation9 + $0x30] sm:$0xf]
      %v535 = vld [vmem:[#allocation9 + $0x34] sm:$0xf]
      %v536 = vld [vmem:[#allocation9 + $0x38] sm:$0xf]
      %v537 = vld [vmem:[#allocation9 + $0x3c] sm:$0xf]
      %v538 = vld [vmem:[#allocation11] sm:$0x1]
      %v540 = vlaneseq
      %v541 = vshrl.u32 %v540, 7
      %v542 = vsub.s32 0, %v541
      %v543 = vrot.slane %v538, %v542
      %v561 = vunpack.c.l.b16 %v522
      %v562 = vunpack.c.l.b16 %v523
      %v563 = vunpack.c.l.b16 %v524
      %v564 = vunpack.c.l.b16 %v525
      %v565 = vunpack.c.l.b16 %v526
      %v566 = vunpack.c.l.b16 %v527
      %v567 = vunpack.c.l.b16 %v528
      %v568 = vunpack.c.l.b16 %v529
      %v569 = vunpack.c.l.b16 %v530
      %v570 = vunpack.c.l.b16 %v531
      %v571 = vunpack.c.l.b16 %v532
      %v572 = vunpack.c.l.b16 %v533
      %v573 = vunpack.c.l.b16 %v534
      %v574 = vunpack.c.l.b16 %v535
      %v575 = vunpack.c.l.b16 %v536
      %v576 = vunpack.c.l.b16 %v537
      %v577 = vpack.c.b16 %v562, %v561
      %v578 = vpack.c.b16 %v564, %v563
      %v579 = vpack.c.b16 %v566, %v565
      %v580 = vpack.c.b16 %v568, %v567
      %v581 = vpack.c.b16 %v570, %v569
      %v582 = vpack.c.b16 %v572, %v571
      %v583 = vpack.c.b16 %v574, %v573
      %v584 = vpack.c.b16 %v576, %v575
      %593 = vmatprep.subr.bf16.mxu0 0
      %594 = vmatpush1.bf16.msra.mxu0 %v577
      %595 = vmatprep.subr.bf16.mxu0 0
      %596 = vmatpush1.bf16.msra.mxu0 %v578
      %597 = vmatprep.subr.bf16.mxu0 0
      %598 = vmatpush1.bf16.msra.mxu0 %v579
      %599 = vmatprep.subr.bf16.mxu0 0
      %600 = vmatpush1.bf16.msra.mxu0 %v580
      %601 = vmatprep.subr.bf16.mxu0 0
      %602 = vmatpush1.bf16.msra.mxu0 %v581
      %603 = vmatprep.subr.bf16.mxu0 0
      %604 = vmatpush1.bf16.msra.mxu0 %v582
      %605 = vmatprep.subr.bf16.mxu0 0
      %606 = vmatpush1.bf16.msra.mxu0 %v583
      %607 = vmatprep.subr.bf16.mxu0 0
      %608 = vmatpush1.bf16.msra.mxu0 %v584
      %609 = vmatprep.subr.bf16.mxu0 0
      %610 = vmatpush1.bf16.msra.mxu0 0
      %611 = vmatprep.subr.bf16.mxu0 0
      %612 = vmatpush1.bf16.msra.mxu0 0
      %613 = vmatprep.subr.bf16.mxu0 0
      %614 = vmatpush1.bf16.msra.mxu0 0
      %615 = vmatprep.subr.bf16.mxu0 0
      %616 = vmatpush1.bf16.msra.mxu0 0
      %617 = vmatprep.subr.bf16.mxu0 0
      %618 = vmatpush1.bf16.msra.mxu0 0
      %619 = vmatprep.subr.bf16.mxu0 0
      %620 = vmatpush1.bf16.msra.mxu0 0
      %621 = vmatprep.subr.bf16.mxu0 0
      %622 = vmatpush1.bf16.msra.mxu0 0
      %623 = vmatprep.subr.bf16.mxu0 0
      %624 = vmatpush1.bf16.msra.mxu0 0
      %625 = vmatprep.mubr.bf16.mxu0 0
      %626 = vmatmul.mubr.bf16.gmra.mrb[0].mxu0 %v521
      %v627 = vpop.f32.mrb[0].mxu0
      %v628 = vadd.f32 %v543, %v627
      %v629 = vpop.f32.mrb[0].mxu0
      %v630 = vpop.f32.mrb[0].mxu0
      %v631 = vpop.f32.mrb[0].mxu0
      %632 = vdwg.mxu0
      %v633 = vld [vmem:[#allocation12] sm:$0xff]
      %v634 = vld [vmem:[#allocation14] sm:$0x1]
      %v636 = vlaneseq
      %v637 = vshrl.u32 %v636, 7
      %v638 = vsub.s32 0, %v637
      %v639 = vrot.slane %v634, %v638
      %v641 = vmul.f32 %v633, %v639
      %v642 = vld [vmem:[#allocation15] sm:$0x1]
      %v644 = vlaneseq
      %v645 = vshrl.u32 %v644, 7
      %v646 = vsub.s32 0, %v645
      %v647 = vrot.slane %v642, %v646
      %v649 = vadd.f32 %v641, %v647
      %v650 = vpack.c.bf16 %v649, %v649
      %v651 = vld [vmem:[#allocation17] sm:$0xf]
      %v652 = vld [vmem:[#allocation17 + $0x4] sm:$0x1]
      %v653 = vld [vmem:[#allocation18] sm:$0x1]
      %v655 = vlaneseq
      %v656 = vshrl.u32 %v655, 7
      %v657 = vsub.s32 0, %v656
      %v658 = vrot.slane %v653, %v657
      %v662 = vunpack.c.l.b16 %v651
      %v663 = vunpack.c.l.b16 %v652
      %v664 = vpack.c.b16 %v663, %v662
      %vm665 = vcmask 80896
      %v667 = vsel %vm665, %v650, 0
      %vm669 = vcmask 1044480
      %v671 = vsel %vm669, %v664, 0
      %673 = vmatprep.subr.bf16.mxu0 0
      %674 = vmatpush1.bf16.msra.mxu0 %v671
      %675 = vmatprep.subr.bf16.mxu0 0
      %676 = vmatpush1.bf16.msra.mxu0 0
      %677 = vmatprep.subr.bf16.mxu0 0
      %678 = vmatpush1.bf16.msra.mxu0 0
      %679 = vmatprep.subr.bf16.mxu0 0
      %680 = vmatpush1.bf16.msra.mxu0 0
      %681 = vmatprep.subr.bf16.mxu0 0
      %682 = vmatpush1.bf16.msra.mxu0 0
      %683 = vmatprep.subr.bf16.mxu0 0
      %684 = vmatpush1.bf16.msra.mxu0 0
      %685 = vmatprep.subr.bf16.mxu0 0
      %686 = vmatpush1.bf16.msra.mxu0 0
      %687 = vmatprep.subr.bf16.mxu0 0
      %688 = vmatpush1.bf16.msra.mxu0 0
      %689 = vmatprep.subr.bf16.mxu0 0
      %690 = vmatpush1.bf16.msra.mxu0 0
      %691 = vmatprep.subr.bf16.mxu0 0
      %692 = vmatpush1.bf16.msra.mxu0 0
      %693 = vmatprep.subr.bf16.mxu0 0
      %694 = vmatpush1.bf16.msra.mxu0 0
      %695 = vmatprep.subr.bf16.mxu0 0
      %696 = vmatpush1.bf16.msra.mxu0 0
      %697 = vmatprep.subr.bf16.mxu0 0
      %698 = vmatpush1.bf16.msra.mxu0 0
      %699 = vmatprep.subr.bf16.mxu0 0
      %700 = vmatpush1.bf16.msra.mxu0 0
      %701 = vmatprep.subr.bf16.mxu0 0
      %702 = vmatpush1.bf16.msra.mxu0 0
      %703 = vmatprep.subr.bf16.mxu0 0
      %704 = vmatpush1.bf16.msra.mxu0 0
      %705 = vmatprep.mubr.bf16.mxu0 0
      %706 = vmatmul.mubr.bf16.gmra.mrb[0].mxu0 %v667
      %v707 = vpop.f32.mrb[0].mxu0
      %v708 = vadd.f32 %v658, %v707
      %v709 = vpop.f32.mrb[0].mxu0
      %v710 = vpop.f32.mrb[0].mxu0
      %v711 = vpop.f32.mrb[0].mxu0
      %712 = vdwg.mxu0
      %v713 = vmul.f32 %v708, %v708
      %v714 = vmul.f32 %v708, %v713
      %v715 = vmul.f32 %v714, 0.044715
      %v716 = vadd.f32 %v708, %v715
      %v717 = vmul.f32 %v716, 0.7978846
      %v718 = vtanh.pop %v717
      %v719 = vadd.f32 %v718, 1.0
      %v720 = vmul.f32 %v719, 0.5
      %v721 = vmul.f32 %v708, %v720
      %v722 = vpack.c.bf16 %v721, %v721
      %v723 = vld [vmem:[#allocation20] sm:$0xf]
      %v724 = vld [vmem:[#allocation20 + $0x4] sm:$0xf]
      %v725 = vld [vmem:[#allocation20 + $0x8] sm:$0xf]
      %v726 = vld [vmem:[#allocation20 + $0xc] sm:$0xf]
      %v727 = vld [vmem:[#allocation20 + $0x10] sm:$0xf]
      %v728 = vld [vmem:[#allocation20 + $0x14] sm:$0xf]
      %v729 = vld [vmem:[#allocation20 + $0x18] sm:$0xf]
      %v730 = vld [vmem:[#allocation20 + $0x1c] sm:$0xf]
      %v731 = vld [vmem:[#allocation20 + $0x20] sm:$0xf]
      %v732 = vld [vmem:[#allocation20 + $0x24] sm:$0xf]
      %v733 = vld [vmem:[#allocation20 + $0x28] sm:$0xf]
      %v734 = vld [vmem:[#allocation20 + $0x2c] sm:$0xf]
      %v735 = vld [vmem:[#allocation20 + $0x30] sm:$0xf]
      %v736 = vld [vmem:[#allocation20 + $0x34] sm:$0xf]
      %v737 = vld [vmem:[#allocation20 + $0x38] sm:$0xf]
      %v738 = vld [vmem:[#allocation20 + $0x3c] sm:$0xf]
      %v739 = vld [vmem:[#allocation21] sm:$0x1]
      %v741 = vlaneseq
      %v742 = vshrl.u32 %v741, 7
      %v743 = vsub.s32 0, %v742
      %v744 = vrot.slane %v739, %v743
      %v762 = vunpack.c.l.b16 %v723
      %v763 = vunpack.c.l.b16 %v724
      %v764 = vunpack.c.l.b16 %v725
      %v765 = vunpack.c.l.b16 %v726
      %v766 = vunpack.c.l.b16 %v727
      %v767 = vunpack.c.l.b16 %v728
      %v768 = vunpack.c.l.b16 %v729
      %v769 = vunpack.c.l.b16 %v730
      %v770 = vunpack.c.l.b16 %v731
      %v771 = vunpack.c.l.b16 %v732
      %v772 = vunpack.c.l.b16 %v733
      %v773 = vunpack.c.l.b16 %v734
      %v774 = vunpack.c.l.b16 %v735
      %v775 = vunpack.c.l.b16 %v736
      %v776 = vunpack.c.l.b16 %v737
      %v777 = vunpack.c.l.b16 %v738
      %v778 = vpack.c.b16 %v763, %v762
      %v779 = vpack.c.b16 %v765, %v764
      %v780 = vpack.c.b16 %v767, %v766
      %v781 = vpack.c.b16 %v769, %v768
      %v782 = vpack.c.b16 %v771, %v770
      %v783 = vpack.c.b16 %v773, %v772
      %v784 = vpack.c.b16 %v775, %v774
      %v785 = vpack.c.b16 %v777, %v776
      %794 = vmatprep.subr.bf16.mxu0 0
      %795 = vmatpush1.bf16.msra.mxu0 %v778
      %796 = vmatprep.subr.bf16.mxu0 0
      %797 = vmatpush1.bf16.msra.mxu0 %v779
      %798 = vmatprep.subr.bf16.mxu0 0
      %799 = vmatpush1.bf16.msra.mxu0 %v780
      %800 = vmatprep.subr.bf16.mxu0 0
      %801 = vmatpush1.bf16.msra.mxu0 %v781
      %802 = vmatprep.subr.bf16.mxu0 0
      %803 = vmatpush1.bf16.msra.mxu0 %v782
      %804 = vmatprep.subr.bf16.mxu0 0
      %805 = vmatpush1.bf16.msra.mxu0 %v783
      %806 = vmatprep.subr.bf16.mxu0 0
      %807 = vmatpush1.bf16.msra.mxu0 %v784
      %808 = vmatprep.subr.bf16.mxu0 0
      %809 = vmatpush1.bf16.msra.mxu0 %v785
      %810 = vmatprep.subr.bf16.mxu0 0
      %811 = vmatpush1.bf16.msra.mxu0 0
      %812 = vmatprep.subr.bf16.mxu0 0
      %813 = vmatpush1.bf16.msra.mxu0 0
      %814 = vmatprep.subr.bf16.mxu0 0
      %815 = vmatpush1.bf16.msra.mxu0 0
      %816 = vmatprep.subr.bf16.mxu0 0
      %817 = vmatpush1.bf16.msra.mxu0 0
      %818 = vmatprep.subr.bf16.mxu0 0
      %819 = vmatpush1.bf16.msra.mxu0 0
      %820 = vmatprep.subr.bf16.mxu0 0
      %821 = vmatpush1.bf16.msra.mxu0 0
      %822 = vmatprep.subr.bf16.mxu0 0
      %823 = vmatpush1.bf16.msra.mxu0 0
      %824 = vmatprep.subr.bf16.mxu0 0
      %825 = vmatpush1.bf16.msra.mxu0 0
      %826 = vmatprep.mubr.bf16.mxu0 0
      %827 = vmatmul.mubr.bf16.gmra.mrb[0].mxu0 %v722
      %v828 = vpop.f32.mrb[0].mxu0
      %v829 = vadd.f32 %v744, %v828
      %v830 = vpop.f32.mrb[0].mxu0
      %v831 = vpop.f32.mrb[0].mxu0
      %v832 = vpop.f32.mrb[0].mxu0
      %833 = vdwg.mxu0
      %v834 = vpack.c.bf16 %v829, %v829
      %v835 = vld [vmem:[#allocation23] sm:$0xf]
      %v836 = vld [vmem:[#allocation23 + $0x4] sm:$0xf]
      %v837 = vld [vmem:[#allocation23 + $0x8] sm:$0xf]
      %v838 = vld [vmem:[#allocation23 + $0xc] sm:$0xf]
      %v839 = vld [vmem:[#allocation23 + $0x10] sm:$0xf]
      %v840 = vld [vmem:[#allocation23 + $0x14] sm:$0xf]
      %v841 = vld [vmem:[#allocation23 + $0x18] sm:$0xf]
      %v842 = vld [vmem:[#allocation23 + $0x1c] sm:$0xf]
      %v843 = vld [vmem:[#allocation23 + $0x20] sm:$0xf]
      %v844 = vld [vmem:[#allocation23 + $0x24] sm:$0xf]
      %v845 = vld [vmem:[#allocation23 + $0x28] sm:$0xf]
      %v846 = vld [vmem:[#allocation23 + $0x2c] sm:$0xf]
      %v847 = vld [vmem:[#allocation23 + $0x30] sm:$0xf]
      %v848 = vld [vmem:[#allocation23 + $0x34] sm:$0xf]
      %v849 = vld [vmem:[#allocation23 + $0x38] sm:$0xf]
      %v850 = vld [vmem:[#allocation23 + $0x3c] sm:$0xf]
      %v867 = vunpack.c.l.b16 %v835
      %v868 = vunpack.c.l.b16 %v836
      %v869 = vunpack.c.l.b16 %v837
      %v870 = vunpack.c.l.b16 %v838
      %v871 = vunpack.c.l.b16 %v839
      %v872 = vunpack.c.l.b16 %v840
      %v873 = vunpack.c.l.b16 %v841
      %v874 = vunpack.c.l.b16 %v842
      %v875 = vunpack.c.l.b16 %v843
      %v876 = vunpack.c.l.b16 %v844
      %v877 = vunpack.c.l.b16 %v845
      %v878 = vunpack.c.l.b16 %v846
      %v879 = vunpack.c.l.b16 %v847
      %v880 = vunpack.c.l.b16 %v848
      %v881 = vunpack.c.l.b16 %v849
      %v882 = vunpack.c.l.b16 %v850
      %v883 = vpack.c.b16 %v868, %v867
      %v884 = vpack.c.b16 %v870, %v869
      %v885 = vpack.c.b16 %v872, %v871
      %v886 = vpack.c.b16 %v874, %v873
      %v887 = vpack.c.b16 %v876, %v875
      %v888 = vpack.c.b16 %v878, %v877
      %v889 = vpack.c.b16 %v880, %v879
      %v890 = vpack.c.b16 %v882, %v881
      %899 = vmatprep.subr.bf16.mxu0 0
      %900 = vmatpush1.bf16.msra.mxu0 %v883
      %901 = vmatprep.subr.bf16.mxu0 0
      %902 = vmatpush1.bf16.msra.mxu0 %v884
      %903 = vmatprep.subr.bf16.mxu0 0
      %904 = vmatpush1.bf16.msra.mxu0 %v885
      %905 = vmatprep.subr.bf16.mxu0 0
      %906 = vmatpush1.bf16.msra.mxu0 %v886
      %907 = vmatprep.subr.bf16.mxu0 0
      %908 = vmatpush1.bf16.msra.mxu0 %v887
      %909 = vmatprep.subr.bf16.mxu0 0
      %910 = vmatpush1.bf16.msra.mxu0 %v888
      %911 = vmatprep.subr.bf16.mxu0 0
      %912 = vmatpush1.bf16.msra.mxu0 %v889
      %913 = vmatprep.subr.bf16.mxu0 0
      %914 = vmatpush1.bf16.msra.mxu0 %v890
      %915 = vmatprep.subr.bf16.mxu0 0
      %916 = vmatpush1.bf16.msra.mxu0 0
      %917 = vmatprep.subr.bf16.mxu0 0
      %918 = vmatpush1.bf16.msra.mxu0 0
      %919 = vmatprep.subr.bf16.mxu0 0
      %920 = vmatpush1.bf16.msra.mxu0 0
      %921 = vmatprep.subr.bf16.mxu0 0
      %922 = vmatpush1.bf16.msra.mxu0 0
      %923 = vmatprep.subr.bf16.mxu0 0
      %924 = vmatpush1.bf16.msra.mxu0 0
      %925 = vmatprep.subr.bf16.mxu0 0
      %926 = vmatpush1.bf16.msra.mxu0 0
      %927 = vmatprep.subr.bf16.mxu0 0
      %928 = vmatpush1.bf16.msra.mxu0 0
      %929 = vmatprep.subr.bf16.mxu0 0
      %930 = vmatpush1.bf16.msra.mxu0 0
      %931 = vmatprep.mubr.bf16.mxu0 0
      %932 = vmatmul.mubr.bf16.gmra.mrb[0].mxu0 %v834
      %v933 = vpop.f32.mrb[0].mxu0
      %v934 = vadd.f32 0.0, %v933
      %v935 = vpop.f32.mrb[0].mxu0
      %v936 = vpop.f32.mrb[0].mxu0
      %v937 = vpop.f32.mrb[0].mxu0
      %938 = vdwg.mxu0
      %v939 = vadd.f32 %v628, %v934
      %v940 = vld [vmem:[#allocation24] sm:$0x1]
      %v942 = vlaneseq
      %v943 = vshrl.u32 %v942, 7
      %v944 = vsub.s32 0, %v943
      %v945 = vrot.slane %v940, %v944
      %v947 = vadd.f32 %v939, %v945
      %vm948 = vcmp.lt.s32.totalorder %v356, 32
      %949 = vadd.xlane.f32.xlu0 %v947
      %v950 = vpop.xlane.xlu0 %949
      %v951 = vmul.f32 %v950, 0.03125
      %v952 = vsub.f32 %v947, %v951
      %v953 = vsel %vm948, %v952, 0.0
      %v954 = vmul.f32 %v953, %v953
      %955 = vadd.xlane.f32.xlu0 %v954
      %v956 = vpop.xlane.xlu0 %955
      %v957 = vmul.f32 %v956, 0.03125
      %v958 = vadd.f32 %v957, 1e-05
      %v959 = vrsqrt.pop %v958
      %v960 = vmul.f32 %v953, %v959
      %v961 = vld [vmem:[#allocation26] sm:$0x1]
      %v963 = vlaneseq
      %v964 = vshrl.u32 %v963, 7
      %v965 = vsub.s32 0, %v964
      %v966 = vrot.slane %v961, %v965
      %v968 = vmul.f32 %v960, %v966
      %v969 = vld [vmem:[#allocation27] sm:$0x1]
      %v971 = vlaneseq
      %v972 = vshrl.u32 %v971, 7
      %v973 = vsub.s32 0, %v972
      %v974 = vrot.slane %v969, %v973
      %v976 = vadd.f32 %v968, %v974
      %977 = vst [vmem:[#allocation29] sm:$0xff] %v976
    $region137: #{tpu_custom_call.1} parent=1 // pred_fallthru
      _
    // Predicated region
    $region138: #{tpu_custom_call.1} parent=1 // pred_check
      _
    $region139: #{tpu_custom_call.1} parent=1 // pred_check_branch
      %979 = sbr.rel (0) target = $region141
    $region140: #{tpu_custom_call.1} parent=1 // pred_region
      %s981 = ssub.s32 128, 128
      %982 = vsyncadd [#allocation5], %s981
      %s984 = sshll.u32 [#allocation29], 4
      %s985 = int_to_ptr.vmem [resolvable:$true] %s984
      %987 = dma.vmem_to_hbm [thread:$0]  %s985, 128, %s16, [#allocation5]
    $region141: #{tpu_custom_call.1} parent=1 // pred_fallthru
      _
    // Predicated region
    $region142: #{tpu_custom_call.1} parent=1 // pred_check
      _
    $region143: #{tpu_custom_call.1} parent=1 // pred_check_branch
      %989 = sbr.rel (0) target = $region145
    $region144: #{tpu_custom_call.1} parent=1 // pred_region
      %990 = dma.done [#allocation5], 128
    $region145: #{tpu_custom_call.1} parent=1 // pred_fallthru
      _
    %991 = vsyncpa [#allocation4], 1
    %992 = vsyncpa [#allocation7], 1
    %993 = vsyncpa [#allocation10], 1
    %994 = vsyncpa [#allocation13], 1
    %995 = vsyncpa [#allocation16], 1
    %996 = vsyncpa [#allocation19], 1
    %997 = vsyncpa [#allocation22], 1
    %998 = vsyncpa [#allocation25], 1
    %999 = vsyncpa [#allocation28], 1
    %1000 = vsyncpa [#allocation5], 1

</llo_original>
